<compile_context>
chip_gen: v6e
topology: v6e:2x2x1
jax: 0.10.0
libtpu: 0.0.40
codegen_flags: <defaults>
</compile_context>

<pallas_src>
import functools

import jax
import jax.numpy as jnp
from jax.experimental import pallas as pl
from jax.experimental.pallas import tpu as pltpu

LATENT_DIM = 200
HIDDEN_DIM = 400
OUTPUT_DIM = 784  # flattened 28x28 MNIST image

_LANE = 128
_SUBLANE_BF16 = 16  # bf16 packs 16 rows per vreg sublane group


def _round_up(x, m):
    return ((x + m - 1) // m) * m


def _cdiv(a, b):
    return -(-a // b)


def _leaky_relu(x, slope=0.2):
    # f32 epilogue on the VPU (equivalent to where(x>0, x, slope*x)).
    return jnp.maximum(x, slope * x)


def decoder_kernel(x_ref, w1_ref, b1_ref, w2_ref, b2_ref, w3_ref, b3_ref, out_ref):
    """Whole 3-layer MLP fused for one batch tile.

    x arrives as f32 and is cast to bf16 in VMEM (no wrapper pad/cast pass);
    weights are pre-packed bf16; accumulation and the activation epilogue are f32.
    """
    x = x_ref[...].astype(jnp.bfloat16)  # (tile_b, 200)

    h = jnp.dot(x, w1_ref[...], preferred_element_type=jnp.float32) + b1_ref[...]
    h = _leaky_relu(h)

    h = jnp.dot(h.astype(jnp.bfloat16), w2_ref[...],
                preferred_element_type=jnp.float32) + b2_ref[...]
    h = _leaky_relu(h)

    y = jnp.dot(h.astype(jnp.bfloat16), w3_ref[...],
                preferred_element_type=jnp.float32) + b3_ref[...]

    # sigmoid(y) = 1 / (1 + exp(-y)); exp + approx reciprocal both use the EUP
    # slot instead of a full-precision VALU divide.
    e = jnp.exp(-y)
    out_ref[...] = pl.reciprocal(1.0 + e, approx=True).astype(out_ref.dtype)


def prepack_params(params):
    """One-time weight prep: pad hidden dim to a lane multiple, cast to bf16.

    Hoisted out of the per-call path so the forward pass never re-pads /
    re-casts the weights. Zero padding is exact through the MLP
    (leaky_relu(0) == 0, padded weight rows/cols are 0).
    """
    L, H = params["w1"].shape
    O = params["w3"].shape[1]
    Hp = _round_up(H, _LANE)  # 400 -> 512 (VMEM-only intermediate, never hits HBM)

    def pad2(a, r, c):
        return jnp.pad(a, ((0, r - a.shape[0]), (0, c - a.shape[1])))

    w1 = pad2(params["w1"], L, Hp).astype(jnp.bfloat16)   # (200, 512)
    w2 = pad2(params["w2"], Hp, Hp).astype(jnp.bfloat16)  # (512, 512)
    w3 = pad2(params["w3"], Hp, O).astype(jnp.bfloat16)   # (512, 784) — output lanes NOT padded
    b1 = pad2(params["b1"], 1, Hp).astype(jnp.float32)
    b2 = pad2(params["b2"], 1, Hp).astype(jnp.float32)
    b3 = params["b3"].astype(jnp.float32)                 # (1, 784)
    return (w1, b1, w2, b2, w3, b3)


@functools.partial(jax.jit, static_argnames=("max_batch_tile", "out_dtype"))
def decoder_forward(x, packed, *, max_batch_tile=512, out_dtype=jnp.float32):
    """x: (B, latent_dim) float32. packed: output of prepack_params.

    Returns (B, output_dim) in out_dtype (f32 by default; bf16 halves the
    dominant output HBM stream on v6e/v7x).
    """
    B, L = x.shape
    Hp = packed[0].shape[1]
    O = packed[4].shape[1]

    # ---- batch tiling ----------------------------------------------------
    # * tile is a multiple of 16 (bf16 sublane packing)
    # * minimize batch padding (< 16 wasted rows per tile — matters on v5e
    #   where the kernel is MXU-bound)
    # * >= 2 grid steps when B >= 32 so both v7x TensorCores get work
    n_tiles = max(_cdiv(B, max_batch_tile), 2 if B >= 2 * _SUBLANE_BF16 else 1)
    batch_tile = _round_up(_cdiv(B, n_tiles), _SUBLANE_BF16)
    Bp = n_tiles * batch_tile

    # Row-pad x only when needed (no-op pad is elided by XLA when Bp == B).
    x_p = jnp.pad(x, ((0, Bp - B), (0, 0)))

    w1, b1, w2, b2, w3, b3 = packed

    # x / out are tiled along the batch axis; weights & biases are whole-array
    # blocks resident in VMEM (~1.5 MiB of bf16 weights).
    in_specs = [
        pl.BlockSpec((batch_tile, L), lambda i: (i, 0)),  # x (f32, true width 200)
        pl.BlockSpec((L, Hp), lambda i: (0, 0)),          # w1
        pl.BlockSpec((1, Hp), lambda i: (0, 0)),          # b1
        pl.BlockSpec((Hp, Hp), lambda i: (0, 0)),         # w2
        pl.BlockSpec((1, Hp), lambda i: (0, 0)),          # b2
        pl.BlockSpec((Hp, O), lambda i: (0, 0)),          # w3
        pl.BlockSpec((1, O), lambda i: (0, 0)),           # b3
    ]
    out_spec = pl.BlockSpec((batch_tile, O), lambda i: (i, 0))

    out = pl.pallas_call(
        decoder_kernel,
        out_shape=jax.ShapeDtypeStruct((Bp, O), out_dtype),
        grid=(n_tiles,),
        in_specs=in_specs,
        out_specs=out_spec,
        compiler_params=pltpu.CompilerParams(
            dimension_semantics=("parallel",),
        ),
    )(x_p, w1, b1, w2, b2, w3, b3)

    # Only slice when batch padding was actually needed (never for B % tile == 0).
    return out if Bp == B else out[:B]


def init_params(key, latent_dim, hidden_dim, output_dim):
    """Deterministic init mirroring the nn.Linear shapes (stored transposed, f32)."""
    ks = jax.random.split(key, 6)

    def linear(kw, kb, fan_in, fan_out):
        # PyTorch default: U(-1/sqrt(fan_in), 1/sqrt(fan_in))
        bound = 1.0 / jnp.sqrt(fan_in)
        w = jax.random.uniform(kw, (fan_in, fan_out), jnp.float32, -bound, bound)
        b = jax.random.uniform(kb, (1, fan_out), jnp.float32, -bound, bound)
        return w, b

    w1, b1 = linear(ks[0], ks[1], latent_dim, hidden_dim)
    w2, b2 = linear(ks[2], ks[3], hidden_dim, hidden_dim)
    w3, b3 = linear(ks[4], ks[5], hidden_dim, output_dim)
    return {"w1": w1, "b1": b1, "w2": w2, "b2": b2, "w3": w3, "b3": b3}


def decoder_ref(x, p):
    """Pure-JAX f32 reference of the PyTorch forward."""
    h = x @ p["w1"] + p["b1"]
    h = jnp.where(h > 0, h, 0.2 * h)
    h = h @ p["w2"] + p["b2"]
    h = jnp.where(h > 0, h, 0.2 * h)
    y = h @ p["w3"] + p["b3"]
    return jax.nn.sigmoid(y)


if __name__ == "__main__":
    key = jax.random.PRNGKey(0)
    k_param, k_x = jax.random.split(key)

    params = init_params(k_param, LATENT_DIM, HIDDEN_DIM, OUTPUT_DIM)
    packed = prepack_params(params)

    # B=10 exercises the pad+slice fallback; B=32 exercises the multi-tile,
    # zero-padding / zero-slice fast path.
    for B in (10, 32):
        x = jax.random.normal(jax.random.fold_in(k_x, B), (B, LATENT_DIM), jnp.float32)
        out = jax.block_until_ready(decoder_forward(x, packed))
        ref = decoder_ref(x, params)
        assert out.shape == (B, OUTPUT_DIM)
        # bf16 matmul inputs, f32 accumulation, approx reciprocal in the
        # sigmoid: loose tolerance on (0,1)-bounded outputs.
        err = jnp.max(jnp.abs(out - ref))
        assert jnp.allclose(out, ref, atol=2e-2, rtol=2e-2), f"B={B}: max err {err}"

    print("KERNEL_OK")
</pallas_src>

<mosaic_0001>
module attributes {stable_mosaic.version = 11 : i64} {
  func.func @decoder_kernel(%arg0: i32, %arg1: memref<16x200xf32, #tpu.memory_space<vmem>>, %arg2: memref<200x512xbf16, #tpu.memory_space<vmem>>, %arg3: memref<1x512xf32, #tpu.memory_space<vmem>>, %arg4: memref<512x512xbf16, #tpu.memory_space<vmem>>, %arg5: memref<1x512xf32, #tpu.memory_space<vmem>>, %arg6: memref<512x784xbf16, #tpu.memory_space<vmem>>, %arg7: memref<1x784xf32, #tpu.memory_space<vmem>>, %arg8: memref<16x784xf32, #tpu.memory_space<vmem>>) attributes {dimension_semantics = [#tpu.dimension_semantics<parallel>], iteration_bounds = array<i64: 1>, scalar_prefetch = 0 : i64, scratch_operands = 0 : i64, tpu.core_type = #tpu.core_type<tc>, window_params = [{transform_indices = @transform_0, window_bounds = array<i64: 16, 200>}, {pipeline_mode = #tpu.pipeline_mode<synchronous>, transform_indices = @transform_1, window_bounds = array<i64: 200, 512>}, {pipeline_mode = #tpu.pipeline_mode<synchronous>, transform_indices = @transform_2, window_bounds = array<i64: 1, 512>}, {pipeline_mode = #tpu.pipeline_mode<synchronous>, transform_indices = @transform_3, window_bounds = array<i64: 512, 512>}, {pipeline_mode = #tpu.pipeline_mode<synchronous>, transform_indices = @transform_4, window_bounds = array<i64: 1, 512>}, {pipeline_mode = #tpu.pipeline_mode<synchronous>, transform_indices = @transform_5, window_bounds = array<i64: 512, 784>}, {pipeline_mode = #tpu.pipeline_mode<synchronous>, transform_indices = @transform_6, window_bounds = array<i64: 1, 784>}, {transform_indices = @transform_7, window_bounds = array<i64: 16, 784>}]} {
    %c0 = arith.constant 0 : index
    %c0_0 = arith.constant 0 : index
    %0 = vector.load %arg1[%c0, %c0_0] : memref<16x200xf32, #tpu.memory_space<vmem>>, vector<16x200xf32>
    %1 = arith.truncf %0 : vector<16x200xf32> to vector<16x200xbf16>
    %c0_1 = arith.constant 0 : index
    %c0_2 = arith.constant 0 : index
    %2 = vector.load %arg2[%c0_1, %c0_2] : memref<200x512xbf16, #tpu.memory_space<vmem>>, vector<200x512xbf16>
    %cst = arith.constant dense<0.000000e+00> : vector<16x512xf32>
    %3 = tpu.matmul %1, %2, %cst {dimension_numbers = #tpu.dot_dimension_numbers<[1], [0], [0], [1], [0, 0, 1, 1], [], []>} : vector<16x200xbf16>, vector<200x512xbf16>, vector<16x512xf32> -> vector<16x512xf32>
    %c0_3 = arith.constant 0 : index
    %c0_4 = arith.constant 0 : index
    %4 = vector.load %arg3[%c0_3, %c0_4] : memref<1x512xf32, #tpu.memory_space<vmem>>, vector<1x512xf32>
    %5 = vector.broadcast %4 : vector<1x512xf32> to vector<16x512xf32>
    %6 = arith.addf %3, %5 : vector<16x512xf32>
    %cst_5 = arith.constant 2.000000e-01 : f32
    %7 = vector.broadcast %cst_5 : f32 to vector<16x512xf32>
    %8 = arith.mulf %7, %6 : vector<16x512xf32>
    %9 = arith.maximumf %6, %8 : vector<16x512xf32>
    %10 = arith.truncf %9 : vector<16x512xf32> to vector<16x512xbf16>
    %c0_6 = arith.constant 0 : index
    %c0_7 = arith.constant 0 : index
    %11 = vector.load %arg4[%c0_6, %c0_7] : memref<512x512xbf16, #tpu.memory_space<vmem>>, vector<512x512xbf16>
    %cst_8 = arith.constant dense<0.000000e+00> : vector<16x512xf32>
    %12 = tpu.matmul %10, %11, %cst_8 {dimension_numbers = #tpu.dot_dimension_numbers<[1], [0], [0], [1], [0, 0, 1, 1], [], []>} : vector<16x512xbf16>, vector<512x512xbf16>, vector<16x512xf32> -> vector<16x512xf32>
    %c0_9 = arith.constant 0 : index
    %c0_10 = arith.constant 0 : index
    %13 = vector.load %arg5[%c0_9, %c0_10] : memref<1x512xf32, #tpu.memory_space<vmem>>, vector<1x512xf32>
    %14 = vector.broadcast %13 : vector<1x512xf32> to vector<16x512xf32>
    %15 = arith.addf %12, %14 : vector<16x512xf32>
    %cst_11 = arith.constant 2.000000e-01 : f32
    %16 = vector.broadcast %cst_11 : f32 to vector<16x512xf32>
    %17 = arith.mulf %16, %15 : vector<16x512xf32>
    %18 = arith.maximumf %15, %17 : vector<16x512xf32>
    %19 = arith.truncf %18 : vector<16x512xf32> to vector<16x512xbf16>
    %c0_12 = arith.constant 0 : index
    %c0_13 = arith.constant 0 : index
    %20 = vector.load %arg6[%c0_12, %c0_13] : memref<512x784xbf16, #tpu.memory_space<vmem>>, vector<512x784xbf16>
    %cst_14 = arith.constant dense<0.000000e+00> : vector<16x784xf32>
    %21 = tpu.matmul %19, %20, %cst_14 {dimension_numbers = #tpu.dot_dimension_numbers<[1], [0], [0], [1], [0, 0, 1, 1], [], []>} : vector<16x512xbf16>, vector<512x784xbf16>, vector<16x784xf32> -> vector<16x784xf32>
    %c0_15 = arith.constant 0 : index
    %c0_16 = arith.constant 0 : index
    %22 = vector.load %arg7[%c0_15, %c0_16] : memref<1x784xf32, #tpu.memory_space<vmem>>, vector<1x784xf32>
    %23 = vector.broadcast %22 : vector<1x784xf32> to vector<16x784xf32>
    %24 = arith.addf %21, %23 : vector<16x784xf32>
    %cst_17 = arith.constant 0.000000e+00 : f32
    %25 = vector.broadcast %cst_17 : f32 to vector<16x784xf32>
    %26 = arith.subf %25, %24 : vector<16x784xf32>
    %27 = math.exp %26 : vector<16x784xf32>
    %cst_18 = arith.constant 1.000000e+00 : f32
    %28 = vector.broadcast %cst_18 : f32 to vector<16x784xf32>
    %29 = arith.addf %28, %27 : vector<16x784xf32>
    %30 = tpu.reciprocal %29 {approx = true} : vector<16x784xf32> -> vector<16x784xf32>
    %c0_19 = arith.constant 0 : index
    %c0_20 = arith.constant 0 : index
    %31 = vector.load %arg8[%c0_19, %c0_20] : memref<16x784xf32, #tpu.memory_space<vmem>>, vector<16x784xf32>
    tpu.vector_store %arg8[%c0_19, %c0_20], %30 {strides = array<i32>} : memref<16x784xf32, #tpu.memory_space<vmem>>, vector<16x784xf32>,
    return
  }
  func.func @transform_0(%arg0: i32) -> (i32, i32) {
    %c0_i32 = arith.constant 0 : i32
    %c0_i32_0 = arith.constant 0 : i32
    return %arg0, %c0_i32 : i32, i32
  }
  func.func @transform_1(%arg0: i32) -> (i32, i32) {
    %c0_i32 = arith.constant 0 : i32
    %c0_i32_0 = arith.constant 0 : i32
    %c0_i32_1 = arith.constant 0 : i32
    return %c0_i32, %c0_i32_0 : i32, i32
  }
  func.func @transform_2(%arg0: i32) -> (i32, i32) {
    %c0_i32 = arith.constant 0 : i32
    %c0_i32_0 = arith.constant 0 : i32
    %c0_i32_1 = arith.constant 0 : i32
    return %c0_i32, %c0_i32_0 : i32, i32
  }
  func.func @transform_3(%arg0: i32) -> (i32, i32) {
    %c0_i32 = arith.constant 0 : i32
    %c0_i32_0 = arith.constant 0 : i32
    %c0_i32_1 = arith.constant 0 : i32
    return %c0_i32, %c0_i32_0 : i32, i32
  }
  func.func @transform_4(%arg0: i32) -> (i32, i32) {
    %c0_i32 = arith.constant 0 : i32
    %c0_i32_0 = arith.constant 0 : i32
    %c0_i32_1 = arith.constant 0 : i32
    return %c0_i32, %c0_i32_0 : i32, i32
  }
  func.func @transform_5(%arg0: i32) -> (i32, i32) {
    %c0_i32 = arith.constant 0 : i32
    %c0_i32_0 = arith.constant 0 : i32
    %c0_i32_1 = arith.constant 0 : i32
    return %c0_i32, %c0_i32_0 : i32, i32
  }
  func.func @transform_6(%arg0: i32) -> (i32, i32) {
    %c0_i32 = arith.constant 0 : i32
    %c0_i32_0 = arith.constant 0 : i32
    %c0_i32_1 = arith.constant 0 : i32
    return %c0_i32, %c0_i32_0 : i32, i32
  }
  func.func @transform_7(%arg0: i32) -> (i32, i32) {
    %c0_i32 = arith.constant 0 : i32
    %c0_i32_0 = arith.constant 0 : i32
    return %arg0, %c0_i32 : i32, i32
  }
}

</mosaic_0001>

<llo_original>
// kernel: decoder_forward.1
$region0: #{decoder_forward.1}
  #allocation0 [shape = 'u32[]', space=smem, size = 0x4, offset = 0x4, fixed_abs, tag = 'smem constant byte address 0x4 - core index']
  #allocation1 [shape = 'u32[144,128]{1,0:T(1,128)}', space=vmem, size = 0x12000, scoped, tag = 'internal scratch']
  %s0 = inlined_call_operand.vmem [shape: f32[16,200], index: 0, kind: input, shape index: {}]
  %s1 = inlined_call_operand.vmem [shape: bf16[200,512], index: 1, kind: input, shape index: {}]
  %s2 = inlined_call_operand.vmem [shape: f32[1,512], index: 2, kind: input, shape index: {}]
  %s3 = inlined_call_operand.vmem [shape: bf16[512,512], index: 3, kind: input, shape index: {}]
  %s4 = inlined_call_operand.vmem [shape: f32[1,512], index: 4, kind: input, shape index: {}]
  %s5 = inlined_call_operand.vmem [shape: bf16[512,784], index: 5, kind: input, shape index: {}]
  %s6 = inlined_call_operand.vmem [shape: f32[1,784], index: 6, kind: input, shape index: {}]
  %s7 = inlined_call_operand.hbm [shape: f32[16,784], index: 7, kind: output, shape index: {}]
  %s8 = sld [smem:[#allocation0]]
  $region38: #{decoder_forward.1} parent=0
    _
  %s10 = ssub.s32 1, %s8
  %s11 = scalar_select 0, %s10, %s8
  $region1: #{decoder_forward.1} parent=0
    #allocation2 [shape = 'u8[57344]{0}', space=vmem, size = 0xe000, scoped, tag = 'output window, operand 0, single buffered']
    #allocation3 [shape = 's32[1]{0}', space=sflag, size = 0x4, scoped, tag = 'scoped memory for decoder_forward.1']
    %12 = vsyncpa [#allocation3], 0
    // Predicated region
    $region2: #{decoder_forward.1} parent=1 // pred_check
      _
    $region3: #{decoder_forward.1} parent=1 // pred_check_branch
      %14 = sbr.rel (0) target = $region5
    $region4: #{decoder_forward.1} parent=1 // pred_region
      _
    $region5: #{decoder_forward.1} parent=1 // pred_fallthru
      _
    // Predicated region
    $region6: #{decoder_forward.1} parent=1 // pred_check
      _
    $region7: #{decoder_forward.1} parent=1 // pred_check_branch
      %16 = sbr.rel (0) target = $region9
    $region8: #{decoder_forward.1} parent=1 // pred_region
      _
    $region9: #{decoder_forward.1} parent=1 // pred_fallthru
      _
    // Predicated region
    $region10: #{decoder_forward.1} parent=1 // pred_check
      _
    $region11: #{decoder_forward.1} parent=1 // pred_check_branch
      %18 = sbr.rel (0) target = $region13
    $region12: #{decoder_forward.1} parent=1 // pred_region
      _
    $region13: #{decoder_forward.1} parent=1 // pred_fallthru
      _
    // Predicated region
    $region14: #{decoder_forward.1} parent=1 // pred_check
      _
    $region15: #{decoder_forward.1} parent=1 // pred_check_branch
      %20 = sbr.rel (0) target = $region17
    $region16: #{decoder_forward.1} parent=1 // pred_region
      _
    $region17: #{decoder_forward.1} parent=1 // pred_fallthru
      _
    // Predicated region
    $region18: #{decoder_forward.1} parent=1 // pred_check
      _
    $region19: #{decoder_forward.1} parent=1 // pred_check_branch
      %22 = sbr.rel (0) target = $region21
    $region20: #{decoder_forward.1} parent=1 // pred_region
      _
    $region21: #{decoder_forward.1} parent=1 // pred_fallthru
      _
    // Predicated region
    $region22: #{decoder_forward.1} parent=1 // pred_check
      _
    $region23: #{decoder_forward.1} parent=1 // pred_check_branch
      %24 = sbr.rel (0) target = $region25
    $region24: #{decoder_forward.1} parent=1 // pred_region
      _
    $region25: #{decoder_forward.1} parent=1 // pred_fallthru
      _
    // Predicated region
    $region26: #{decoder_forward.1} parent=1 // pred_check
      _
    $region27: #{decoder_forward.1} parent=1 // pred_check_branch
      %26 = sbr.rel (0) target = $region29
    $region28: #{decoder_forward.1} parent=1 // pred_region
      _
    $region29: #{decoder_forward.1} parent=1 // pred_fallthru
      _
    %v28 = vld [vmem:[%s0] sm:$0xff]
    %v29 = vld [vmem:[%s0 + $0x8] sm:$0xff]
    %v30 = vld [vmem:[%s0 + $0x10] sm:$0xff]
    %v31 = vld [vmem:[%s0 + $0x18] sm:$0xff]
    %v32 = vpack.c.bf16 %v30, %v28
    %v33 = vpack.c.bf16 %v31, %v29
    %v34 = vld [vmem:[%s1] sm:$0xff]
    %v35 = vld [vmem:[%s1 + $0x8] sm:$0xff]
    %v36 = vld [vmem:[%s1 + $0x10] sm:$0xff]
    %v37 = vld [vmem:[%s1 + $0x18] sm:$0xff]
    %v38 = vld [vmem:[%s1 + $0x20] sm:$0xff]
    %v39 = vld [vmem:[%s1 + $0x28] sm:$0xff]
    %v40 = vld [vmem:[%s1 + $0x30] sm:$0xff]
    %v41 = vld [vmem:[%s1 + $0x38] sm:$0xff]
    %v42 = vld [vmem:[%s1 + $0x40] sm:$0xff]
    %v43 = vld [vmem:[%s1 + $0x48] sm:$0xff]
    %v44 = vld [vmem:[%s1 + $0x50] sm:$0xff]
    %v45 = vld [vmem:[%s1 + $0x58] sm:$0xff]
    %v46 = vld [vmem:[%s1 + $0x60] sm:$0xff]
    %v47 = vld [vmem:[%s1 + $0x68] sm:$0xff]
    %v48 = vld [vmem:[%s1 + $0x70] sm:$0xff]
    %v49 = vld [vmem:[%s1 + $0x78] sm:$0xff]
    %v50 = vld [vmem:[%s1 + $0x80] sm:$0xff]
    %v51 = vld [vmem:[%s1 + $0x88] sm:$0xff]
    %v52 = vld [vmem:[%s1 + $0x90] sm:$0xff]
    %v53 = vld [vmem:[%s1 + $0x98] sm:$0xff]
    %v54 = vld [vmem:[%s1 + $0xa0] sm:$0xff]
    %v55 = vld [vmem:[%s1 + $0xa8] sm:$0xff]
    %v56 = vld [vmem:[%s1 + $0xb0] sm:$0xff]
    %v57 = vld [vmem:[%s1 + $0xb8] sm:$0xff]
    %v58 = vld [vmem:[%s1 + $0xc0] sm:$0xff]
    %v59 = vld [vmem:[%s1 + $0xc8] sm:$0xff]
    %v60 = vld [vmem:[%s1 + $0xd0] sm:$0xff]
    %v61 = vld [vmem:[%s1 + $0xd8] sm:$0xff]
    %v62 = vld [vmem:[%s1 + $0xe0] sm:$0xff]
    %v63 = vld [vmem:[%s1 + $0xe8] sm:$0xff]
    %v64 = vld [vmem:[%s1 + $0xf0] sm:$0xff]
    %v65 = vld [vmem:[%s1 + $0xf8] sm:$0xff]
    %v66 = vld [vmem:[%s1 + $0x100] sm:$0xff]
    %v67 = vld [vmem:[%s1 + $0x108] sm:$0xff]
    %v68 = vld [vmem:[%s1 + $0x110] sm:$0xff]
    %v69 = vld [vmem:[%s1 + $0x118] sm:$0xff]
    %v70 = vld [vmem:[%s1 + $0x120] sm:$0xff]
    %v71 = vld [vmem:[%s1 + $0x128] sm:$0xff]
    %v72 = vld [vmem:[%s1 + $0x130] sm:$0xff]
    %v73 = vld [vmem:[%s1 + $0x138] sm:$0xff]
    %v74 = vld [vmem:[%s1 + $0x140] sm:$0xff]
    %v75 = vld [vmem:[%s1 + $0x148] sm:$0xff]
    %v76 = vld [vmem:[%s1 + $0x150] sm:$0xff]
    %v77 = vld [vmem:[%s1 + $0x158] sm:$0xff]
    %v78 = vld [vmem:[%s1 + $0x160] sm:$0xff]
    %v79 = vld [vmem:[%s1 + $0x168] sm:$0xff]
    %v80 = vld [vmem:[%s1 + $0x170] sm:$0xff]
    %v81 = vld [vmem:[%s1 + $0x178] sm:$0xff]
    %v82 = vld [vmem:[%s1 + $0x180] sm:$0xff]
    %v83 = vld [vmem:[%s1 + $0x188] sm:$0xff]
    %v84 = vld [vmem:[%s2] sm:$0xf]
    %v86 = vlaneseq
    %v87 = vshrl.u32 %v86, 7
    %v88 = vsub.s32 0, %v87
    %v89 = vrot.slane %v84, %v88
    %v90 = vlaneseq
    %v91 = vshrl.u32 %v90, 7
    %v92 = vsub.s32 1, %v91
    %v93 = vrot.slane %v84, %v92
    %v94 = vlaneseq
    %v95 = vshrl.u32 %v94, 7
    %v96 = vsub.s32 2, %v95
    %v97 = vrot.slane %v84, %v96
    %v98 = vlaneseq
    %v99 = vshrl.u32 %v98, 7
    %v100 = vsub.s32 3, %v99
    %v101 = vrot.slane %v84, %v100
    %v156 = vunpack.c.l.b16 %v34
    %v157 = vunpack.c.h.b16 %v34
    %v158 = vunpack.c.l.b16 %v35
    %v159 = vunpack.c.h.b16 %v35
    %v160 = vunpack.c.l.b16 %v36
    %v161 = vunpack.c.h.b16 %v36
    %v162 = vunpack.c.l.b16 %v37
    %v163 = vunpack.c.h.b16 %v37
    %v164 = vunpack.c.l.b16 %v38
    %v165 = vunpack.c.h.b16 %v38
    %v166 = vunpack.c.l.b16 %v39
    %v167 = vunpack.c.h.b16 %v39
    %v168 = vunpack.c.l.b16 %v40
    %v169 = vunpack.c.h.b16 %v40
    %v170 = vunpack.c.l.b16 %v41
    %v171 = vunpack.c.h.b16 %v41
    %v172 = vunpack.c.l.b16 %v42
    %v173 = vunpack.c.h.b16 %v42
    %v174 = vunpack.c.l.b16 %v43
    %v175 = vunpack.c.h.b16 %v43
    %v176 = vunpack.c.l.b16 %v44
    %v177 = vunpack.c.h.b16 %v44
    %v178 = vunpack.c.l.b16 %v45
    %v179 = vunpack.c.h.b16 %v45
    %v180 = vunpack.c.l.b16 %v46
    %v181 = vunpack.c.h.b16 %v46
    %v182 = vunpack.c.l.b16 %v47
    %v183 = vunpack.c.h.b16 %v47
    %v184 = vunpack.c.l.b16 %v48
    %v185 = vunpack.c.h.b16 %v48
    %v186 = vunpack.c.l.b16 %v49
    %v187 = vunpack.c.h.b16 %v49
    %v188 = vunpack.c.l.b16 %v50
    %v189 = vunpack.c.h.b16 %v50
    %v190 = vunpack.c.l.b16 %v51
    %v191 = vunpack.c.h.b16 %v51
    %v192 = vunpack.c.l.b16 %v52
    %v193 = vunpack.c.h.b16 %v52
    %v194 = vunpack.c.l.b16 %v53
    %v195 = vunpack.c.h.b16 %v53
    %v196 = vunpack.c.l.b16 %v54
    %v197 = vunpack.c.h.b16 %v54
    %v198 = vunpack.c.l.b16 %v55
    %v199 = vunpack.c.h.b16 %v55
    %v200 = vunpack.c.l.b16 %v56
    %v201 = vunpack.c.h.b16 %v56
    %v202 = vunpack.c.l.b16 %v57
    %v203 = vunpack.c.h.b16 %v57
    %v204 = vunpack.c.l.b16 %v58
    %v205 = vunpack.c.h.b16 %v58
    %v206 = vunpack.c.l.b16 %v59
    %v207 = vunpack.c.h.b16 %v59
    %v208 = vunpack.c.l.b16 %v60
    %v209 = vunpack.c.h.b16 %v60
    %v210 = vunpack.c.l.b16 %v61
    %v211 = vunpack.c.h.b16 %v61
    %v212 = vunpack.c.l.b16 %v62
    %v213 = vunpack.c.h.b16 %v62
    %v214 = vunpack.c.l.b16 %v63
    %v215 = vunpack.c.h.b16 %v63
    %v216 = vunpack.c.l.b16 %v64
    %v217 = vunpack.c.h.b16 %v64
    %v218 = vunpack.c.l.b16 %v65
    %v219 = vunpack.c.h.b16 %v65
    %v220 = vunpack.c.l.b16 %v66
    %v221 = vunpack.c.h.b16 %v66
    %v222 = vunpack.c.l.b16 %v67
    %v223 = vunpack.c.h.b16 %v67
    %v224 = vunpack.c.l.b16 %v68
    %v225 = vunpack.c.h.b16 %v68
    %v226 = vunpack.c.l.b16 %v69
    %v227 = vunpack.c.h.b16 %v69
    %v228 = vunpack.c.l.b16 %v70
    %v229 = vunpack.c.h.b16 %v70
    %v230 = vunpack.c.l.b16 %v71
    %v231 = vunpack.c.h.b16 %v71
    %v232 = vunpack.c.l.b16 %v72
    %v233 = vunpack.c.h.b16 %v72
    %v234 = vunpack.c.l.b16 %v73
    %v235 = vunpack.c.h.b16 %v73
    %v236 = vunpack.c.l.b16 %v74
    %v237 = vunpack.c.h.b16 %v74
    %v238 = vunpack.c.l.b16 %v75
    %v239 = vunpack.c.h.b16 %v75
    %v240 = vunpack.c.l.b16 %v76
    %v241 = vunpack.c.h.b16 %v76
    %v242 = vunpack.c.l.b16 %v77
    %v243 = vunpack.c.h.b16 %v77
    %v244 = vunpack.c.l.b16 %v78
    %v245 = vunpack.c.h.b16 %v78
    %v246 = vunpack.c.l.b16 %v79
    %v247 = vunpack.c.h.b16 %v79
    %v248 = vunpack.c.l.b16 %v80
    %v249 = vunpack.c.h.b16 %v80
    %v250 = vunpack.c.l.b16 %v81
    %v251 = vunpack.c.h.b16 %v81
    %v252 = vunpack.c.l.b16 %v82
    %v253 = vunpack.c.h.b16 %v82
    %v254 = vunpack.c.l.b16 %v83
    %v255 = vunpack.c.h.b16 %v83
    %v256 = vpack.c.b16 %v160, %v156
    %v257 = vpack.c.b16 %v161, %v157
    %v258 = vpack.c.b16 %v162, %v158
    %v259 = vpack.c.b16 %v163, %v159
    %v260 = vpack.c.b16 %v168, %v164
    %v261 = vpack.c.b16 %v169, %v165
    %v262 = vpack.c.b16 %v170, %v166
    %v263 = vpack.c.b16 %v171, %v167
    %v264 = vpack.c.b16 %v176, %v172
    %v265 = vpack.c.b16 %v177, %v173
    %v266 = vpack.c.b16 %v178, %v174
    %v267 = vpack.c.b16 %v179, %v175
    %v268 = vpack.c.b16 %v184, %v180
    %v269 = vpack.c.b16 %v185, %v181
    %v270 = vpack.c.b16 %v186, %v182
    %v271 = vpack.c.b16 %v187, %v183
    %v272 = vpack.c.b16 %v192, %v188
    %v273 = vpack.c.b16 %v193, %v189
    %v274 = vpack.c.b16 %v194, %v190
    %v275 = vpack.c.b16 %v195, %v191
    %v276 = vpack.c.b16 %v200, %v196
    %v277 = vpack.c.b16 %v201, %v197
    %v278 = vpack.c.b16 %v202, %v198
    %v279 = vpack.c.b16 %v203, %v199
    %v280 = vpack.c.b16 %v208, %v204
    %v281 = vpack.c.b16 %v209, %v205
    %v282 = vpack.c.b16 %v210, %v206
    %v283 = vpack.c.b16 %v211, %v207
    %v284 = vpack.c.b16 %v216, %v212
    %v285 = vpack.c.b16 %v217, %v213
    %v286 = vpack.c.b16 %v218, %v214
    %v287 = vpack.c.b16 %v219, %v215
    %v288 = vpack.c.b16 %v224, %v220
    %v289 = vpack.c.b16 %v225, %v221
    %v290 = vpack.c.b16 %v226, %v222
    %v291 = vpack.c.b16 %v227, %v223
    %v292 = vpack.c.b16 %v232, %v228
    %v293 = vpack.c.b16 %v233, %v229
    %v294 = vpack.c.b16 %v234, %v230
    %v295 = vpack.c.b16 %v235, %v231
    %v296 = vpack.c.b16 %v240, %v236
    %v297 = vpack.c.b16 %v241, %v237
    %v298 = vpack.c.b16 %v242, %v238
    %v299 = vpack.c.b16 %v243, %v239
    %v300 = vpack.c.b16 %v248, %v244
    %v301 = vpack.c.b16 %v249, %v245
    %v302 = vpack.c.b16 %v250, %v246
    %v303 = vpack.c.b16 %v251, %v247
    %v304 = vpack.c.b16 %v252, %v252
    %v305 = vpack.c.b16 %v253, %v253
    %v306 = vpack.c.b16 %v254, %v254
    %v307 = vpack.c.b16 %v255, %v255
    %vm356 = vcmask 588800
    %v358 = vsel %vm356, %v33, 0
    %vm360 = vcmask 1043456
    %v362 = vsel %vm360, %v304, 0
    %v365 = vsel %vm360, %v305, 0
    %v368 = vsel %vm360, %v306, 0
    %v371 = vsel %vm360, %v307, 0
    %373 = vmatprep.subr.bf16.mxu0 %v285
    %374 = vmatpush1.bf16.msra.mxu0 %v284
    %375 = vmatprep.subr.bf16.mxu0 %v281
    %376 = vmatpush1.bf16.msra.mxu0 %v280
    %377 = vmatprep.subr.bf16.mxu0 %v277
    %378 = vmatpush1.bf16.msra.mxu0 %v276
    %379 = vmatprep.subr.bf16.mxu0 %v273
    %380 = vmatpush1.bf16.msra.mxu0 %v272
    %381 = vmatprep.subr.bf16.mxu0 %v269
    %382 = vmatpush1.bf16.msra.mxu0 %v268
    %383 = vmatprep.subr.bf16.mxu0 %v265
    %384 = vmatpush1.bf16.msra.mxu0 %v264
    %385 = vmatprep.subr.bf16.mxu0 %v261
    %386 = vmatpush1.bf16.msra.mxu0 %v260
    %387 = vmatprep.subr.bf16.mxu0 %v257
    %388 = vmatpush1.bf16.msra.mxu0 %v256
    %389 = vmatprep.subr.bf16.mxu0 0
    %390 = vmatpush2.bf16.msra.mxu0 0
    %391 = vmatprep.subr.bf16.mxu0 0
    %392 = vmatpush2.bf16.msra.mxu0 0
    %393 = vmatprep.subr.bf16.mxu0 0
    %394 = vmatpush2.bf16.msra.mxu0 0
    %395 = vmatprep.subr.bf16.mxu0 %v365
    %396 = vmatpush2.bf16.msra.mxu0 %v362
    %397 = vmatprep.subr.bf16.mxu0 %v301
    %398 = vmatpush2.bf16.msra.mxu0 %v300
    %399 = vmatprep.subr.bf16.mxu0 %v297
    %400 = vmatpush2.bf16.msra.mxu0 %v296
    %401 = vmatprep.subr.bf16.mxu0 %v293
    %402 = vmatpush2.bf16.msra.mxu0 %v292
    %403 = vmatprep.subr.bf16.mxu0 %v289
    %404 = vmatpush2.bf16.msra.mxu0 %v288
    %405 = vmatprep.mubr.bf16.mxu0 %v358
    %406 = vmatmul.mubr.bf16.gmra.mxu0 %v32
    %v407 = vpop.f32.mrf.mxu0
    %v408 = vadd.f32 %v89, %v407
    %v409 = vpop.f32.mrf.mxu0
    %v410 = vadd.f32 %v93, %v409
    %v411 = vpop.f32.mrf.mxu0
    %v412 = vadd.f32 %v89, %v411
    %v413 = vpop.f32.mrf.mxu0
    %v414 = vadd.f32 %v93, %v413
    %415 = vdwg.mxu0
    %416 = vmatprep.subr.bf16.mxu0 %v287
    %417 = vmatpush1.bf16.msra.mxu0 %v286
    %418 = vmatprep.subr.bf16.mxu0 %v283
    %419 = vmatpush1.bf16.msra.mxu0 %v282
    %420 = vmatprep.subr.bf16.mxu0 %v279
    %421 = vmatpush1.bf16.msra.mxu0 %v278
    %422 = vmatprep.subr.bf16.mxu0 %v275
    %423 = vmatpush1.bf16.msra.mxu0 %v274
    %424 = vmatprep.subr.bf16.mxu0 %v271
    %425 = vmatpush1.bf16.msra.mxu0 %v270
    %426 = vmatprep.subr.bf16.mxu0 %v267
    %427 = vmatpush1.bf16.msra.mxu0 %v266
    %428 = vmatprep.subr.bf16.mxu0 %v263
    %429 = vmatpush1.bf16.msra.mxu0 %v262
    %430 = vmatprep.subr.bf16.mxu0 %v259
    %431 = vmatpush1.bf16.msra.mxu0 %v258
    %432 = vmatprep.subr.bf16.mxu0 0
    %433 = vmatpush2.bf16.msra.mxu0 0
    %434 = vmatprep.subr.bf16.mxu0 0
    %435 = vmatpush2.bf16.msra.mxu0 0
    %436 = vmatprep.subr.bf16.mxu0 0
    %437 = vmatpush2.bf16.msra.mxu0 0
    %438 = vmatprep.subr.bf16.mxu0 %v371
    %439 = vmatpush2.bf16.msra.mxu0 %v368
    %440 = vmatprep.subr.bf16.mxu0 %v303
    %441 = vmatpush2.bf16.msra.mxu0 %v302
    %442 = vmatprep.subr.bf16.mxu0 %v299
    %443 = vmatpush2.bf16.msra.mxu0 %v298
    %444 = vmatprep.subr.bf16.mxu0 %v295
    %445 = vmatpush2.bf16.msra.mxu0 %v294
    %446 = vmatprep.subr.bf16.mxu0 %v291
    %447 = vmatpush2.bf16.msra.mxu0 %v290
    %448 = vmatprep.mubr.bf16.mxu0 %v358
    %449 = vmatmul.mubr.bf16.gmra.mxu0 %v32
    %v450 = vpop.f32.mrf.mxu0
    %v451 = vadd.f32 %v97, %v450
    %v452 = vpop.f32.mrf.mxu0
    %v453 = vadd.f32 %v101, %v452
    %v454 = vpop.f32.mrf.mxu0
    %v455 = vadd.f32 %v97, %v454
    %v456 = vpop.f32.mrf.mxu0
    %v457 = vadd.f32 %v101, %v456
    %458 = vdwg.mxu0
    %v459 = vmul.f32 %v408, 0.2
    %v460 = vmul.f32 %v410, 0.2
    %v461 = vmul.f32 %v451, 0.2
    %v462 = vmul.f32 %v453, 0.2
    %v463 = vmul.f32 %v412, 0.2
    %v464 = vmul.f32 %v414, 0.2
    %v465 = vmul.f32 %v455, 0.2
    %v466 = vmul.f32 %v457, 0.2
    %v467 = vmax.f32 %v408, %v459
    %v468 = vmax.f32 %v410, %v460
    %v469 = vmax.f32 %v451, %v461
    %v470 = vmax.f32 %v453, %v462
    %v471 = vmax.f32 %v412, %v463
    %v472 = vmax.f32 %v414, %v464
    %v473 = vmax.f32 %v455, %v465
    %v474 = vmax.f32 %v457, %v466
    %v475 = vpack.c.bf16 %v471, %v467
    %v476 = vpack.c.bf16 %v472, %v468
    %v477 = vpack.c.bf16 %v473, %v469
    %v478 = vpack.c.bf16 %v474, %v470
    %v479 = vld [vmem:[%s3] sm:$0xff]
    %v480 = vld [vmem:[%s3 + $0x8] sm:$0xff]
    %v481 = vld [vmem:[%s3 + $0x10] sm:$0xff]
    %v482 = vld [vmem:[%s3 + $0x18] sm:$0xff]
    %v483 = vld [vmem:[%s3 + $0x20] sm:$0xff]
    %v484 = vld [vmem:[%s3 + $0x28] sm:$0xff]
    %v485 = vld [vmem:[%s3 + $0x30] sm:$0xff]
    %v486 = vld [vmem:[%s3 + $0x38] sm:$0xff]
    %v487 = vld [vmem:[%s3 + $0x40] sm:$0xff]
    %v488 = vld [vmem:[%s3 + $0x48] sm:$0xff]
    %v489 = vld [vmem:[%s3 + $0x50] sm:$0xff]
    %v490 = vld [vmem:[%s3 + $0x58] sm:$0xff]
    %v491 = vld [vmem:[%s3 + $0x60] sm:$0xff]
    %v492 = vld [vmem:[%s3 + $0x68] sm:$0xff]
    %v493 = vld [vmem:[%s3 + $0x70] sm:$0xff]
    %v494 = vld [vmem:[%s3 + $0x78] sm:$0xff]
    %v495 = vld [vmem:[%s3 + $0x80] sm:$0xff]
    %v496 = vld [vmem:[%s3 + $0x88] sm:$0xff]
    %v497 = vld [vmem:[%s3 + $0x90] sm:$0xff]
    %v498 = vld [vmem:[%s3 + $0x98] sm:$0xff]
    %v499 = vld [vmem:[%s3 + $0xa0] sm:$0xff]
    %v500 = vld [vmem:[%s3 + $0xa8] sm:$0xff]
    %v501 = vld [vmem:[%s3 + $0xb0] sm:$0xff]
    %v502 = vld [vmem:[%s3 + $0xb8] sm:$0xff]
    %v503 = vld [vmem:[%s3 + $0xc0] sm:$0xff]
    %v504 = vld [vmem:[%s3 + $0xc8] sm:$0xff]
    %v505 = vld [vmem:[%s3 + $0xd0] sm:$0xff]
    %v506 = vld [vmem:[%s3 + $0xd8] sm:$0xff]
    %v507 = vld [vmem:[%s3 + $0xe0] sm:$0xff]
    %v508 = vld [vmem:[%s3 + $0xe8] sm:$0xff]
    %v509 = vld [vmem:[%s3 + $0xf0] sm:$0xff]
    %v510 = vld [vmem:[%s3 + $0xf8] sm:$0xff]
    %v511 = vld [vmem:[%s3 + $0x100] sm:$0xff]
    %v512 = vld [vmem:[%s3 + $0x108] sm:$0xff]
    %v513 = vld [vmem:[%s3 + $0x110] sm:$0xff]
    %v514 = vld [vmem:[%s3 + $0x118] sm:$0xff]
    %v515 = vld [vmem:[%s3 + $0x120] sm:$0xff]
    %v516 = vld [vmem:[%s3 + $0x128] sm:$0xff]
    %v517 = vld [vmem:[%s3 + $0x130] sm:$0xff]
    %v518 = vld [vmem:[%s3 + $0x138] sm:$0xff]
    %v519 = vld [vmem:[%s3 + $0x140] sm:$0xff]
    %v520 = vld [vmem:[%s3 + $0x148] sm:$0xff]
    %v521 = vld [vmem:[%s3 + $0x150] sm:$0xff]
    %v522 = vld [vmem:[%s3 + $0x158] sm:$0xff]
    %v523 = vld [vmem:[%s3 + $0x160] sm:$0xff]
    %v524 = vld [vmem:[%s3 + $0x168] sm:$0xff]
    %v525 = vld [vmem:[%s3 + $0x170] sm:$0xff]
    %v526 = vld [vmem:[%s3 + $0x178] sm:$0xff]
    %v527 = vld [vmem:[%s3 + $0x180] sm:$0xff]
    %v528 = vld [vmem:[%s3 + $0x188] sm:$0xff]
    %v529 = vld [vmem:[%s3 + $0x190] sm:$0xff]
    %v530 = vld [vmem:[%s3 + $0x198] sm:$0xff]
    %v531 = vld [vmem:[%s3 + $0x1a0] sm:$0xff]
    %v532 = vld [vmem:[%s3 + $0x1a8] sm:$0xff]
    %v533 = vld [vmem:[%s3 + $0x1b0] sm:$0xff]
    %v534 = vld [vmem:[%s3 + $0x1b8] sm:$0xff]
    %v535 = vld [vmem:[%s3 + $0x1c0] sm:$0xff]
    %v536 = vld [vmem:[%s3 + $0x1c8] sm:$0xff]
    %v537 = vld [vmem:[%s3 + $0x1d0] sm:$0xff]
    %v538 = vld [vmem:[%s3 + $0x1d8] sm:$0xff]
    %v539 = vld [vmem:[%s3 + $0x1e0] sm:$0xff]
    %v540 = vld [vmem:[%s3 + $0x1e8] sm:$0xff]
    %v541 = vld [vmem:[%s3 + $0x1f0] sm:$0xff]
    %v542 = vld [vmem:[%s3 + $0x1f8] sm:$0xff]
    %v543 = vld [vmem:[%s3 + $0x200] sm:$0xff]
    %v544 = vld [vmem:[%s3 + $0x208] sm:$0xff]
    %v545 = vld [vmem:[%s3 + $0x210] sm:$0xff]
    %v546 = vld [vmem:[%s3 + $0x218] sm:$0xff]
    %v547 = vld [vmem:[%s3 + $0x220] sm:$0xff]
    %v548 = vld [vmem:[%s3 + $0x228] sm:$0xff]
    %v549 = vld [vmem:[%s3 + $0x230] sm:$0xff]
    %v550 = vld [vmem:[%s3 + $0x238] sm:$0xff]
    %v551 = vld [vmem:[%s3 + $0x240] sm:$0xff]
    %v552 = vld [vmem:[%s3 + $0x248] sm:$0xff]
    %v553 = vld [vmem:[%s3 + $0x250] sm:$0xff]
    %v554 = vld [vmem:[%s3 + $0x258] sm:$0xff]
    %v555 = vld [vmem:[%s3 + $0x260] sm:$0xff]
    %v556 = vld [vmem:[%s3 + $0x268] sm:$0xff]
    %v557 = vld [vmem:[%s3 + $0x270] sm:$0xff]
    %v558 = vld [vmem:[%s3 + $0x278] sm:$0xff]
    %v559 = vld [vmem:[%s3 + $0x280] sm:$0xff]
    %v560 = vld [vmem:[%s3 + $0x288] sm:$0xff]
    %v561 = vld [vmem:[%s3 + $0x290] sm:$0xff]
    %v562 = vld [vmem:[%s3 + $0x298] sm:$0xff]
    %v563 = vld [vmem:[%s3 + $0x2a0] sm:$0xff]
    %v564 = vld [vmem:[%s3 + $0x2a8] sm:$0xff]
    %v565 = vld [vmem:[%s3 + $0x2b0] sm:$0xff]
    %v566 = vld [vmem:[%s3 + $0x2b8] sm:$0xff]
    %v567 = vld [vmem:[%s3 + $0x2c0] sm:$0xff]
    %v568 = vld [vmem:[%s3 + $0x2c8] sm:$0xff]
    %v569 = vld [vmem:[%s3 + $0x2d0] sm:$0xff]
    %v570 = vld [vmem:[%s3 + $0x2d8] sm:$0xff]
    %v571 = vld [vmem:[%s3 + $0x2e0] sm:$0xff]
    %v572 = vld [vmem:[%s3 + $0x2e8] sm:$0xff]
    %v573 = vld [vmem:[%s3 + $0x2f0] sm:$0xff]
    %v574 = vld [vmem:[%s3 + $0x2f8] sm:$0xff]
    %v575 = vld [vmem:[%s3 + $0x300] sm:$0xff]
    %v576 = vld [vmem:[%s3 + $0x308] sm:$0xff]
    %v577 = vld [vmem:[%s3 + $0x310] sm:$0xff]
    %v578 = vld [vmem:[%s3 + $0x318] sm:$0xff]
    %v579 = vld [vmem:[%s3 + $0x320] sm:$0xff]
    %v580 = vld [vmem:[%s3 + $0x328] sm:$0xff]
    %v581 = vld [vmem:[%s3 + $0x330] sm:$0xff]
    %v582 = vld [vmem:[%s3 + $0x338] sm:$0xff]
    %v583 = vld [vmem:[%s3 + $0x340] sm:$0xff]
    %v584 = vld [vmem:[%s3 + $0x348] sm:$0xff]
    %v585 = vld [vmem:[%s3 + $0x350] sm:$0xff]
    %v586 = vld [vmem:[%s3 + $0x358] sm:$0xff]
    %v587 = vld [vmem:[%s3 + $0x360] sm:$0xff]
    %v588 = vld [vmem:[%s3 + $0x368] sm:$0xff]
    %v589 = vld [vmem:[%s3 + $0x370] sm:$0xff]
    %v590 = vld [vmem:[%s3 + $0x378] sm:$0xff]
    %v591 = vld [vmem:[%s3 + $0x380] sm:$0xff]
    %v592 = vld [vmem:[%s3 + $0x388] sm:$0xff]
    %v593 = vld [vmem:[%s3 + $0x390] sm:$0xff]
    %v594 = vld [vmem:[%s3 + $0x398] sm:$0xff]
    %v595 = vld [vmem:[%s3 + $0x3a0] sm:$0xff]
    %v596 = vld [vmem:[%s3 + $0x3a8] sm:$0xff]
    %v597 = vld [vmem:[%s3 + $0x3b0] sm:$0xff]
    %v598 = vld [vmem:[%s3 + $0x3b8] sm:$0xff]
    %v599 = vld [vmem:[%s3 + $0x3c0] sm:$0xff]
    %v600 = vld [vmem:[%s3 + $0x3c8] sm:$0xff]
    %v601 = vld [vmem:[%s3 + $0x3d0] sm:$0xff]
    %v602 = vld [vmem:[%s3 + $0x3d8] sm:$0xff]
    %v603 = vld [vmem:[%s3 + $0x3e0] sm:$0xff]
    %v604 = vld [vmem:[%s3 + $0x3e8] sm:$0xff]
    %v605 = vld [vmem:[%s3 + $0x3f0] sm:$0xff]
    %v606 = vld [vmem:[%s3 + $0x3f8] sm:$0xff]
    %v607 = vld [vmem:[%s4] sm:$0xf]
    %v609 = vlaneseq
    %v610 = vshrl.u32 %v609, 7
    %v611 = vsub.s32 0, %v610
    %v612 = vrot.slane %v607, %v611
    %v613 = vlaneseq
    %v614 = vshrl.u32 %v613, 7
    %v615 = vsub.s32 1, %v614
    %v616 = vrot.slane %v607, %v615
    %v617 = vlaneseq
    %v618 = vshrl.u32 %v617, 7
    %v619 = vsub.s32 2, %v618
    %v620 = vrot.slane %v607, %v619
    %v621 = vlaneseq
    %v622 = vshrl.u32 %v621, 7
    %v623 = vsub.s32 3, %v622
    %v624 = vrot.slane %v607, %v623
    %v757 = vunpack.c.l.b16 %v479
    %v758 = vunpack.c.h.b16 %v479
    %v759 = vunpack.c.l.b16 %v480
    %v760 = vunpack.c.h.b16 %v480
    %v761 = vunpack.c.l.b16 %v481
    %v762 = vunpack.c.h.b16 %v481
    %v763 = vunpack.c.l.b16 %v482
    %v764 = vunpack.c.h.b16 %v482
    %v765 = vunpack.c.l.b16 %v483
    %v766 = vunpack.c.h.b16 %v483
    %v767 = vunpack.c.l.b16 %v484
    %v768 = vunpack.c.h.b16 %v484
    %v769 = vunpack.c.l.b16 %v485
    %v770 = vunpack.c.h.b16 %v485
    %v771 = vunpack.c.l.b16 %v486
    %v772 = vunpack.c.h.b16 %v486
    %v773 = vunpack.c.l.b16 %v487
    %v774 = vunpack.c.h.b16 %v487
    %v775 = vunpack.c.l.b16 %v488
    %v776 = vunpack.c.h.b16 %v488
    %v777 = vunpack.c.l.b16 %v489
    %v778 = vunpack.c.h.b16 %v489
    %v779 = vunpack.c.l.b16 %v490
    %v780 = vunpack.c.h.b16 %v490
    %v781 = vunpack.c.l.b16 %v491
    %v782 = vunpack.c.h.b16 %v491
    %v783 = vunpack.c.l.b16 %v492
    %v784 = vunpack.c.h.b16 %v492
    %v785 = vunpack.c.l.b16 %v493
    %v786 = vunpack.c.h.b16 %v493
    %v787 = vunpack.c.l.b16 %v494
    %v788 = vunpack.c.h.b16 %v494
    %v789 = vunpack.c.l.b16 %v495
    %v790 = vunpack.c.h.b16 %v495
    %v791 = vunpack.c.l.b16 %v496
    %v792 = vunpack.c.h.b16 %v496
    %v793 = vunpack.c.l.b16 %v497
    %v794 = vunpack.c.h.b16 %v497
    %v795 = vunpack.c.l.b16 %v498
    %v796 = vunpack.c.h.b16 %v498
    %v797 = vunpack.c.l.b16 %v499
    %v798 = vunpack.c.h.b16 %v499
    %v799 = vunpack.c.l.b16 %v500
    %v800 = vunpack.c.h.b16 %v500
    %v801 = vunpack.c.l.b16 %v501
    %v802 = vunpack.c.h.b16 %v501
    %v803 = vunpack.c.l.b16 %v502
    %v804 = vunpack.c.h.b16 %v502
    %v805 = vunpack.c.l.b16 %v503
    %v806 = vunpack.c.h.b16 %v503
    %v807 = vunpack.c.l.b16 %v504
    %v808 = vunpack.c.h.b16 %v504
    %v809 = vunpack.c.l.b16 %v505
    %v810 = vunpack.c.h.b16 %v505
    %v811 = vunpack.c.l.b16 %v506
    %v812 = vunpack.c.h.b16 %v506
    %v813 = vunpack.c.l.b16 %v507
    %v814 = vunpack.c.h.b16 %v507
    %v815 = vunpack.c.l.b16 %v508
    %v816 = vunpack.c.h.b16 %v508
    %v817 = vunpack.c.l.b16 %v509
    %v818 = vunpack.c.h.b16 %v509
    %v819 = vunpack.c.l.b16 %v510
    %v820 = vunpack.c.h.b16 %v510
    %v821 = vunpack.c.l.b16 %v511
    %v822 = vunpack.c.h.b16 %v511
    %v823 = vunpack.c.l.b16 %v512
    %v824 = vunpack.c.h.b16 %v512
    %v825 = vunpack.c.l.b16 %v513
    %v826 = vunpack.c.h.b16 %v513
    %v827 = vunpack.c.l.b16 %v514
    %v828 = vunpack.c.h.b16 %v514
    %v829 = vunpack.c.l.b16 %v515
    %v830 = vunpack.c.h.b16 %v515
    %v831 = vunpack.c.l.b16 %v516
    %v832 = vunpack.c.h.b16 %v516
    %v833 = vunpack.c.l.b16 %v517
    %v834 = vunpack.c.h.b16 %v517
    %v835 = vunpack.c.l.b16 %v518
    %v836 = vunpack.c.h.b16 %v518
    %v837 = vunpack.c.l.b16 %v519
    %v838 = vunpack.c.h.b16 %v519
    %v839 = vunpack.c.l.b16 %v520
    %v840 = vunpack.c.h.b16 %v520
    %v841 = vunpack.c.l.b16 %v521
    %v842 = vunpack.c.h.b16 %v521
    %v843 = vunpack.c.l.b16 %v522
    %v844 = vunpack.c.h.b16 %v522
    %v845 = vunpack.c.l.b16 %v523
    %v846 = vunpack.c.h.b16 %v523
    %v847 = vunpack.c.l.b16 %v524
    %v848 = vunpack.c.h.b16 %v524
    %v849 = vunpack.c.l.b16 %v525
    %v850 = vunpack.c.h.b16 %v525
    %v851 = vunpack.c.l.b16 %v526
    %v852 = vunpack.c.h.b16 %v526
    %v853 = vunpack.c.l.b16 %v527
    %v854 = vunpack.c.h.b16 %v527
    %v855 = vunpack.c.l.b16 %v528
    %v856 = vunpack.c.h.b16 %v528
    %v857 = vunpack.c.l.b16 %v529
    %v858 = vunpack.c.h.b16 %v529
    %v859 = vunpack.c.l.b16 %v530
    %v860 = vunpack.c.h.b16 %v530
    %v861 = vunpack.c.l.b16 %v531
    %v862 = vunpack.c.h.b16 %v531
    %v863 = vunpack.c.l.b16 %v532
    %v864 = vunpack.c.h.b16 %v532
    %v865 = vunpack.c.l.b16 %v533
    %v866 = vunpack.c.h.b16 %v533
    %v867 = vunpack.c.l.b16 %v534
    %v868 = vunpack.c.h.b16 %v534
    %v869 = vunpack.c.l.b16 %v535
    %v870 = vunpack.c.h.b16 %v535
    %v871 = vunpack.c.l.b16 %v536
    %v872 = vunpack.c.h.b16 %v536
    %v873 = vunpack.c.l.b16 %v537
    %v874 = vunpack.c.h.b16 %v537
    %v875 = vunpack.c.l.b16 %v538
    %v876 = vunpack.c.h.b16 %v538
    %v877 = vunpack.c.l.b16 %v539
    %v878 = vunpack.c.h.b16 %v539
    %v879 = vunpack.c.l.b16 %v540
    %v880 = vunpack.c.h.b16 %v540
    %v881 = vunpack.c.l.b16 %v541
    %v882 = vunpack.c.h.b16 %v541
    %v883 = vunpack.c.l.b16 %v542
    %v884 = vunpack.c.h.b16 %v542
    %v885 = vunpack.c.l.b16 %v543
    %v886 = vunpack.c.h.b16 %v543
    %v887 = vunpack.c.l.b16 %v544
    %v888 = vunpack.c.h.b16 %v544
    %v889 = vunpack.c.l.b16 %v545
    %v890 = vunpack.c.h.b16 %v545
    %v891 = vunpack.c.l.b16 %v546
    %v892 = vunpack.c.h.b16 %v546
    %v893 = vunpack.c.l.b16 %v547
    %v894 = vunpack.c.h.b16 %v547
    %v895 = vunpack.c.l.b16 %v548
    %v896 = vunpack.c.h.b16 %v548
    %v897 = vunpack.c.l.b16 %v549
    %v898 = vunpack.c.h.b16 %v549
    %v899 = vunpack.c.l.b16 %v550
    %v900 = vunpack.c.h.b16 %v550
    %v901 = vunpack.c.l.b16 %v551
    %v902 = vunpack.c.h.b16 %v551
    %v903 = vunpack.c.l.b16 %v552
    %v904 = vunpack.c.h.b16 %v552
    %v905 = vunpack.c.l.b16 %v553
    %v906 = vunpack.c.h.b16 %v553
    %v907 = vunpack.c.l.b16 %v554
    %v908 = vunpack.c.h.b16 %v554
    %v909 = vunpack.c.l.b16 %v555
    %v910 = vunpack.c.h.b16 %v555
    %v911 = vunpack.c.l.b16 %v556
    %v912 = vunpack.c.h.b16 %v556
    %v913 = vunpack.c.l.b16 %v557
    %v914 = vunpack.c.h.b16 %v557
    %v915 = vunpack.c.l.b16 %v558
    %v916 = vunpack.c.h.b16 %v558
    %v917 = vunpack.c.l.b16 %v559
    %v918 = vunpack.c.h.b16 %v559
    %v919 = vunpack.c.l.b16 %v560
    %v920 = vunpack.c.h.b16 %v560
    %v921 = vunpack.c.l.b16 %v561
    %v922 = vunpack.c.h.b16 %v561
    %v923 = vunpack.c.l.b16 %v562
    %v924 = vunpack.c.h.b16 %v562
    %v925 = vunpack.c.l.b16 %v563
    %v926 = vunpack.c.h.b16 %v563
    %v927 = vunpack.c.l.b16 %v564
    %v928 = vunpack.c.h.b16 %v564
    %v929 = vunpack.c.l.b16 %v565
    %v930 = vunpack.c.h.b16 %v565
    %v931 = vunpack.c.l.b16 %v566
    %v932 = vunpack.c.h.b16 %v566
    %v933 = vunpack.c.l.b16 %v567
    %v934 = vunpack.c.h.b16 %v567
    %v935 = vunpack.c.l.b16 %v568
    %v936 = vunpack.c.h.b16 %v568
    %v937 = vunpack.c.l.b16 %v569
    %v938 = vunpack.c.h.b16 %v569
    %v939 = vunpack.c.l.b16 %v570
    %v940 = vunpack.c.h.b16 %v570
    %v941 = vunpack.c.l.b16 %v571
    %v942 = vunpack.c.h.b16 %v571
    %v943 = vunpack.c.l.b16 %v572
    %v944 = vunpack.c.h.b16 %v572
    %v945 = vunpack.c.l.b16 %v573
    %v946 = vunpack.c.h.b16 %v573
    %v947 = vunpack.c.l.b16 %v574
    %v948 = vunpack.c.h.b16 %v574
    %v949 = vunpack.c.l.b16 %v575
    %v950 = vunpack.c.h.b16 %v575
    %v951 = vunpack.c.l.b16 %v576
    %v952 = vunpack.c.h.b16 %v576
    %v953 = vunpack.c.l.b16 %v577
    %v954 = vunpack.c.h.b16 %v577
    %v955 = vunpack.c.l.b16 %v578
    %v956 = vunpack.c.h.b16 %v578
    %v957 = vunpack.c.l.b16 %v579
    %v958 = vunpack.c.h.b16 %v579
    %v959 = vunpack.c.l.b16 %v580
    %v960 = vunpack.c.h.b16 %v580
    %v961 = vunpack.c.l.b16 %v581
    %v962 = vunpack.c.h.b16 %v581
    %v963 = vunpack.c.l.b16 %v582
    %v964 = vunpack.c.h.b16 %v582
    %v965 = vunpack.c.l.b16 %v583
    %v966 = vunpack.c.h.b16 %v583
    %v967 = vunpack.c.l.b16 %v584
    %v968 = vunpack.c.h.b16 %v584
    %v969 = vunpack.c.l.b16 %v585
    %v970 = vunpack.c.h.b16 %v585
    %v971 = vunpack.c.l.b16 %v586
    %v972 = vunpack.c.h.b16 %v586
    %v973 = vunpack.c.l.b16 %v587
    %v974 = vunpack.c.h.b16 %v587
    %v975 = vunpack.c.l.b16 %v588
    %v976 = vunpack.c.h.b16 %v588
    %v977 = vunpack.c.l.b16 %v589
    %v978 = vunpack.c.h.b16 %v589
    %v979 = vunpack.c.l.b16 %v590
    %v980 = vunpack.c.h.b16 %v590
    %v981 = vunpack.c.l.b16 %v591
    %v982 = vunpack.c.h.b16 %v591
    %v983 = vunpack.c.l.b16 %v592
    %v984 = vunpack.c.h.b16 %v592
    %v985 = vunpack.c.l.b16 %v593
    %v986 = vunpack.c.h.b16 %v593
    %v987 = vunpack.c.l.b16 %v594
    %v988 = vunpack.c.h.b16 %v594
    %v989 = vunpack.c.l.b16 %v595
    %v990 = vunpack.c.h.b16 %v595
    %v991 = vunpack.c.l.b16 %v596
    %v992 = vunpack.c.h.b16 %v596
    %v993 = vunpack.c.l.b16 %v597
    %v994 = vunpack.c.h.b16 %v597
    %v995 = vunpack.c.l.b16 %v598
    %v996 = vunpack.c.h.b16 %v598
    %v997 = vunpack.c.l.b16 %v599
    %v998 = vunpack.c.h.b16 %v599
    %v999 = vunpack.c.l.b16 %v600
    %v1000 = vunpack.c.h.b16 %v600
    %v1001 = vunpack.c.l.b16 %v601
    %v1002 = vunpack.c.h.b16 %v601
    %v1003 = vunpack.c.l.b16 %v602
    %v1004 = vunpack.c.h.b16 %v602
    %v1005 = vunpack.c.l.b16 %v603
    %v1006 = vunpack.c.h.b16 %v603
    %v1007 = vunpack.c.l.b16 %v604
    %v1008 = vunpack.c.h.b16 %v604
    %v1009 = vunpack.c.l.b16 %v605
    %v1010 = vunpack.c.h.b16 %v605
    %v1011 = vunpack.c.l.b16 %v606
    %v1012 = vunpack.c.h.b16 %v606
    %v1013 = vpack.c.b16 %v761, %v757
    %v1014 = vpack.c.b16 %v762, %v758
    %v1015 = vpack.c.b16 %v763, %v759
    %v1016 = vpack.c.b16 %v764, %v760
    %v1017 = vpack.c.b16 %v769, %v765
    %v1018 = vpack.c.b16 %v770, %v766
    %v1019 = vpack.c.b16 %v771, %v767
    %v1020 = vpack.c.b16 %v772, %v768
    %v1021 = vpack.c.b16 %v777, %v773
    %v1022 = vpack.c.b16 %v778, %v774
    %v1023 = vpack.c.b16 %v779, %v775
    %v1024 = vpack.c.b16 %v780, %v776
    %v1025 = vpack.c.b16 %v785, %v781
    %v1026 = vpack.c.b16 %v786, %v782
    %v1027 = vpack.c.b16 %v787, %v783
    %v1028 = vpack.c.b16 %v788, %v784
    %v1029 = vpack.c.b16 %v793, %v789
    %v1030 = vpack.c.b16 %v794, %v790
    %v1031 = vpack.c.b16 %v795, %v791
    %v1032 = vpack.c.b16 %v796, %v792
    %v1033 = vpack.c.b16 %v801, %v797
    %v1034 = vpack.c.b16 %v802, %v798
    %v1035 = vpack.c.b16 %v803, %v799
    %v1036 = vpack.c.b16 %v804, %v800
    %v1037 = vpack.c.b16 %v809, %v805
    %v1038 = vpack.c.b16 %v810, %v806
    %v1039 = vpack.c.b16 %v811, %v807
    %v1040 = vpack.c.b16 %v812, %v808
    %v1041 = vpack.c.b16 %v817, %v813
    %v1042 = vpack.c.b16 %v818, %v814
    %v1043 = vpack.c.b16 %v819, %v815
    %v1044 = vpack.c.b16 %v820, %v816
    %v1045 = vpack.c.b16 %v825, %v821
    %v1046 = vpack.c.b16 %v826, %v822
    %v1047 = vpack.c.b16 %v827, %v823
    %v1048 = vpack.c.b16 %v828, %v824
    %v1049 = vpack.c.b16 %v833, %v829
    %v1050 = vpack.c.b16 %v834, %v830
    %v1051 = vpack.c.b16 %v835, %v831
    %v1052 = vpack.c.b16 %v836, %v832
    %v1053 = vpack.c.b16 %v841, %v837
    %v1054 = vpack.c.b16 %v842, %v838
    %v1055 = vpack.c.b16 %v843, %v839
    %v1056 = vpack.c.b16 %v844, %v840
    %v1057 = vpack.c.b16 %v849, %v845
    %v1058 = vpack.c.b16 %v850, %v846
    %v1059 = vpack.c.b16 %v851, %v847
    %v1060 = vpack.c.b16 %v852, %v848
    %v1061 = vpack.c.b16 %v857, %v853
    %v1062 = vpack.c.b16 %v858, %v854
    %v1063 = vpack.c.b16 %v859, %v855
    %v1064 = vpack.c.b16 %v860, %v856
    %v1065 = vpack.c.b16 %v865, %v861
    %v1066 = vpack.c.b16 %v866, %v862
    %v1067 = vpack.c.b16 %v867, %v863
    %v1068 = vpack.c.b16 %v868, %v864
    %v1069 = vpack.c.b16 %v873, %v869
    %v1070 = vpack.c.b16 %v874, %v870
    %v1071 = vpack.c.b16 %v875, %v871
    %v1072 = vpack.c.b16 %v876, %v872
    %v1073 = vpack.c.b16 %v881, %v877
    %v1074 = vpack.c.b16 %v882, %v878
    %v1075 = vpack.c.b16 %v883, %v879
    %v1076 = vpack.c.b16 %v884, %v880
    %v1077 = vpack.c.b16 %v889, %v885
    %v1078 = vpack.c.b16 %v890, %v886
    %v1079 = vpack.c.b16 %v891, %v887
    %v1080 = vpack.c.b16 %v892, %v888
    %v1081 = vpack.c.b16 %v897, %v893
    %v1082 = vpack.c.b16 %v898, %v894
    %v1083 = vpack.c.b16 %v899, %v895
    %v1084 = vpack.c.b16 %v900, %v896
    %v1085 = vpack.c.b16 %v905, %v901
    %v1086 = vpack.c.b16 %v906, %v902
    %v1087 = vpack.c.b16 %v907, %v903
    %v1088 = vpack.c.b16 %v908, %v904
    %v1089 = vpack.c.b16 %v913, %v909
    %v1090 = vpack.c.b16 %v914, %v910
    %v1091 = vpack.c.b16 %v915, %v911
    %v1092 = vpack.c.b16 %v916, %v912
    %v1093 = vpack.c.b16 %v921, %v917
    %v1094 = vpack.c.b16 %v922, %v918
    %v1095 = vpack.c.b16 %v923, %v919
    %v1096 = vpack.c.b16 %v924, %v920
    %v1097 = vpack.c.b16 %v929, %v925
    %v1098 = vpack.c.b16 %v930, %v926
    %v1099 = vpack.c.b16 %v931, %v927
    %v1100 = vpack.c.b16 %v932, %v928
    %v1101 = vpack.c.b16 %v937, %v933
    %v1102 = vpack.c.b16 %v938, %v934
    %v1103 = vpack.c.b16 %v939, %v935
    %v1104 = vpack.c.b16 %v940, %v936
    %v1105 = vpack.c.b16 %v945, %v941
    %v1106 = vpack.c.b16 %v946, %v942
    %v1107 = vpack.c.b16 %v947, %v943
    %v1108 = vpack.c.b16 %v948, %v944
    %v1109 = vpack.c.b16 %v953, %v949
    %v1110 = vpack.c.b16 %v954, %v950
    %v1111 = vpack.c.b16 %v955, %v951
    %v1112 = vpack.c.b16 %v956, %v952
    %v1113 = vpack.c.b16 %v961, %v957
    %v1114 = vpack.c.b16 %v962, %v958
    %v1115 = vpack.c.b16 %v963, %v959
    %v1116 = vpack.c.b16 %v964, %v960
    %v1117 = vpack.c.b16 %v969, %v965
    %v1118 = vpack.c.b16 %v970, %v966
    %v1119 = vpack.c.b16 %v971, %v967
    %v1120 = vpack.c.b16 %v972, %v968
    %v1121 = vpack.c.b16 %v977, %v973
    %v1122 = vpack.c.b16 %v978, %v974
    %v1123 = vpack.c.b16 %v979, %v975
    %v1124 = vpack.c.b16 %v980, %v976
    %v1125 = vpack.c.b16 %v985, %v981
    %v1126 = vpack.c.b16 %v986, %v982
    %v1127 = vpack.c.b16 %v987, %v983
    %v1128 = vpack.c.b16 %v988, %v984
    %v1129 = vpack.c.b16 %v993, %v989
    %v1130 = vpack.c.b16 %v994, %v990
    %v1131 = vpack.c.b16 %v995, %v991
    %v1132 = vpack.c.b16 %v996, %v992
    %v1133 = vpack.c.b16 %v1001, %v997
    %v1134 = vpack.c.b16 %v1002, %v998
    %v1135 = vpack.c.b16 %v1003, %v999
    %v1136 = vpack.c.b16 %v1004, %v1000
    %v1137 = vpack.c.b16 %v1009, %v1005
    %v1138 = vpack.c.b16 %v1010, %v1006
    %v1139 = vpack.c.b16 %v1011, %v1007
    %v1140 = vpack.c.b16 %v1012, %v1008
    %1269 = vmatprep.subr.bf16.mxu0 %v1042
    %1270 = vmatpush1.bf16.msra.mxu0 %v1041
    %1271 = vmatprep.subr.bf16.mxu0 %v1038
    %1272 = vmatpush1.bf16.msra.mxu0 %v1037
    %1273 = vmatprep.subr.bf16.mxu0 %v1034
    %1274 = vmatpush1.bf16.msra.mxu0 %v1033
    %1275 = vmatprep.subr.bf16.mxu0 %v1030
    %1276 = vmatpush1.bf16.msra.mxu0 %v1029
    %1277 = vmatprep.subr.bf16.mxu0 %v1026
    %1278 = vmatpush1.bf16.msra.mxu0 %v1025
    %1279 = vmatprep.subr.bf16.mxu0 %v1022
    %1280 = vmatpush1.bf16.msra.mxu0 %v1021
    %1281 = vmatprep.subr.bf16.mxu0 %v1018
    %1282 = vmatpush1.bf16.msra.mxu0 %v1017
    %1283 = vmatprep.subr.bf16.mxu0 %v1014
    %1284 = vmatpush1.bf16.msra.mxu0 %v1013
    %1285 = vmatprep.subr.bf16.mxu0 %v1074
    %1286 = vmatpush2.bf16.msra.mxu0 %v1073
    %1287 = vmatprep.subr.bf16.mxu0 %v1070
    %1288 = vmatpush2.bf16.msra.mxu0 %v1069
    %1289 = vmatprep.subr.bf16.mxu0 %v1066
    %1290 = vmatpush2.bf16.msra.mxu0 %v1065
    %1291 = vmatprep.subr.bf16.mxu0 %v1062
    %1292 = vmatpush2.bf16.msra.mxu0 %v1061
    %1293 = vmatprep.subr.bf16.mxu0 %v1058
    %1294 = vmatpush2.bf16.msra.mxu0 %v1057
    %1295 = vmatprep.subr.bf16.mxu0 %v1054
    %1296 = vmatpush2.bf16.msra.mxu0 %v1053
    %1297 = vmatprep.subr.bf16.mxu0 %v1050
    %1298 = vmatpush2.bf16.msra.mxu0 %v1049
    %1299 = vmatprep.subr.bf16.mxu0 %v1046
    %1300 = vmatpush2.bf16.msra.mxu0 %v1045
    %1301 = vmatprep.mubr.bf16.mxu0 %v476
    %1302 = vmatmul.mubr.bf16.gmra.mxu0 %v475
    %v1303 = vpop.f32.mrf.mxu0
    %v1304 = vadd.f32 %v612, %v1303
    %v1305 = vpop.f32.mrf.mxu0
    %v1306 = vadd.f32 %v616, %v1305
    %v1307 = vpop.f32.mrf.mxu0
    %v1308 = vadd.f32 %v612, %v1307
    %v1309 = vpop.f32.mrf.mxu0
    %v1310 = vadd.f32 %v616, %v1309
    %1311 = vdwg.mxu0
    %1312 = vmatprep.subr.bf16.mxu0 %v1106
    %1313 = vmatpush1.bf16.msra.mxu0 %v1105
    %1314 = vmatprep.subr.bf16.mxu0 %v1102
    %1315 = vmatpush1.bf16.msra.mxu0 %v1101
    %1316 = vmatprep.subr.bf16.mxu0 %v1098
    %1317 = vmatpush1.bf16.msra.mxu0 %v1097
    %1318 = vmatprep.subr.bf16.mxu0 %v1094
    %1319 = vmatpush1.bf16.msra.mxu0 %v1093
    %1320 = vmatprep.subr.bf16.mxu0 %v1090
    %1321 = vmatpush1.bf16.msra.mxu0 %v1089
    %1322 = vmatprep.subr.bf16.mxu0 %v1086
    %1323 = vmatpush1.bf16.msra.mxu0 %v1085
    %1324 = vmatprep.subr.bf16.mxu0 %v1082
    %1325 = vmatpush1.bf16.msra.mxu0 %v1081
    %1326 = vmatprep.subr.bf16.mxu0 %v1078
    %1327 = vmatpush1.bf16.msra.mxu0 %v1077
    %1328 = vmatprep.subr.bf16.mxu0 %v1138
    %1329 = vmatpush2.bf16.msra.mxu0 %v1137
    %1330 = vmatprep.subr.bf16.mxu0 %v1134
    %1331 = vmatpush2.bf16.msra.mxu0 %v1133
    %1332 = vmatprep.subr.bf16.mxu0 %v1130
    %1333 = vmatpush2.bf16.msra.mxu0 %v1129
    %1334 = vmatprep.subr.bf16.mxu0 %v1126
    %1335 = vmatpush2.bf16.msra.mxu0 %v1125
    %1336 = vmatprep.subr.bf16.mxu0 %v1122
    %1337 = vmatpush2.bf16.msra.mxu0 %v1121
    %1338 = vmatprep.subr.bf16.mxu0 %v1118
    %1339 = vmatpush2.bf16.msra.mxu0 %v1117
    %1340 = vmatprep.subr.bf16.mxu0 %v1114
    %1341 = vmatpush2.bf16.msra.mxu0 %v1113
    %1342 = vmatprep.subr.bf16.mxu0 %v1110
    %1343 = vmatpush2.bf16.msra.mxu0 %v1109
    %1344 = vmatprep.mubr.bf16.mxu0 %v478
    %1345 = vmatmul.mubr.bf16.gmra.mxu0 %v477
    %v1346 = vpop.f32.mrf.mxu0
    %v1347 = vadd.f32 %v1304, %v1346
    %v1348 = vpop.f32.mrf.mxu0
    %v1349 = vadd.f32 %v1306, %v1348
    %v1350 = vpop.f32.mrf.mxu0
    %v1351 = vadd.f32 %v1308, %v1350
    %v1352 = vpop.f32.mrf.mxu0
    %v1353 = vadd.f32 %v1310, %v1352
    %1354 = vdwg.mxu0
    %1355 = vmatprep.subr.bf16.mxu0 %v1044
    %1356 = vmatpush1.bf16.msra.mxu0 %v1043
    %1357 = vmatprep.subr.bf16.mxu0 %v1040
    %1358 = vmatpush1.bf16.msra.mxu0 %v1039
    %1359 = vmatprep.subr.bf16.mxu0 %v1036
    %1360 = vmatpush1.bf16.msra.mxu0 %v1035
    %1361 = vmatprep.subr.bf16.mxu0 %v1032
    %1362 = vmatpush1.bf16.msra.mxu0 %v1031
    %1363 = vmatprep.subr.bf16.mxu0 %v1028
    %1364 = vmatpush1.bf16.msra.mxu0 %v1027
    %1365 = vmatprep.subr.bf16.mxu0 %v1024
    %1366 = vmatpush1.bf16.msra.mxu0 %v1023
    %1367 = vmatprep.subr.bf16.mxu0 %v1020
    %1368 = vmatpush1.bf16.msra.mxu0 %v1019
    %1369 = vmatprep.subr.bf16.mxu0 %v1016
    %1370 = vmatpush1.bf16.msra.mxu0 %v1015
    %1371 = vmatprep.subr.bf16.mxu0 %v1076
    %1372 = vmatpush2.bf16.msra.mxu0 %v1075
    %1373 = vmatprep.subr.bf16.mxu0 %v1072
    %1374 = vmatpush2.bf16.msra.mxu0 %v1071
    %1375 = vmatprep.subr.bf16.mxu0 %v1068
    %1376 = vmatpush2.bf16.msra.mxu0 %v1067
    %1377 = vmatprep.subr.bf16.mxu0 %v1064
    %1378 = vmatpush2.bf16.msra.mxu0 %v1063
    %1379 = vmatprep.subr.bf16.mxu0 %v1060
    %1380 = vmatpush2.bf16.msra.mxu0 %v1059
    %1381 = vmatprep.subr.bf16.mxu0 %v1056
    %1382 = vmatpush2.bf16.msra.mxu0 %v1055
    %1383 = vmatprep.subr.bf16.mxu0 %v1052
    %1384 = vmatpush2.bf16.msra.mxu0 %v1051
    %1385 = vmatprep.subr.bf16.mxu0 %v1048
    %1386 = vmatpush2.bf16.msra.mxu0 %v1047
    %1387 = vmatprep.mubr.bf16.mxu0 %v476
    %1388 = vmatmul.mubr.bf16.gmra.mxu0 %v475
    %v1389 = vpop.f32.mrf.mxu0
    %v1390 = vadd.f32 %v620, %v1389
    %v1391 = vpop.f32.mrf.mxu0
    %v1392 = vadd.f32 %v624, %v1391
    %v1393 = vpop.f32.mrf.mxu0
    %v1394 = vadd.f32 %v620, %v1393
    %v1395 = vpop.f32.mrf.mxu0
    %v1396 = vadd.f32 %v624, %v1395
    %1397 = vdwg.mxu0
    %1398 = vmatprep.subr.bf16.mxu0 %v1108
    %1399 = vmatpush1.bf16.msra.mxu0 %v1107
    %1400 = vmatprep.subr.bf16.mxu0 %v1104
    %1401 = vmatpush1.bf16.msra.mxu0 %v1103
    %1402 = vmatprep.subr.bf16.mxu0 %v1100
    %1403 = vmatpush1.bf16.msra.mxu0 %v1099
    %1404 = vmatprep.subr.bf16.mxu0 %v1096
    %1405 = vmatpush1.bf16.msra.mxu0 %v1095
    %1406 = vmatprep.subr.bf16.mxu0 %v1092
    %1407 = vmatpush1.bf16.msra.mxu0 %v1091
    %1408 = vmatprep.subr.bf16.mxu0 %v1088
    %1409 = vmatpush1.bf16.msra.mxu0 %v1087
    %1410 = vmatprep.subr.bf16.mxu0 %v1084
    %1411 = vmatpush1.bf16.msra.mxu0 %v1083
    %1412 = vmatprep.subr.bf16.mxu0 %v1080
    %1413 = vmatpush1.bf16.msra.mxu0 %v1079
    %1414 = vmatprep.subr.bf16.mxu0 %v1140
    %1415 = vmatpush2.bf16.msra.mxu0 %v1139
    %1416 = vmatprep.subr.bf16.mxu0 %v1136
    %1417 = vmatpush2.bf16.msra.mxu0 %v1135
    %1418 = vmatprep.subr.bf16.mxu0 %v1132
    %1419 = vmatpush2.bf16.msra.mxu0 %v1131
    %1420 = vmatprep.subr.bf16.mxu0 %v1128
    %1421 = vmatpush2.bf16.msra.mxu0 %v1127
    %1422 = vmatprep.subr.bf16.mxu0 %v1124
    %1423 = vmatpush2.bf16.msra.mxu0 %v1123
    %1424 = vmatprep.subr.bf16.mxu0 %v1120
    %1425 = vmatpush2.bf16.msra.mxu0 %v1119
    %1426 = vmatprep.subr.bf16.mxu0 %v1116
    %1427 = vmatpush2.bf16.msra.mxu0 %v1115
    %1428 = vmatprep.subr.bf16.mxu0 %v1112
    %1429 = vmatpush2.bf16.msra.mxu0 %v1111
    %1430 = vmatprep.mubr.bf16.mxu0 %v478
    %1431 = vmatmul.mubr.bf16.gmra.mxu0 %v477
    %v1432 = vpop.f32.mrf.mxu0
    %v1433 = vadd.f32 %v1390, %v1432
    %v1434 = vpop.f32.mrf.mxu0
    %v1435 = vadd.f32 %v1392, %v1434
    %v1436 = vpop.f32.mrf.mxu0
    %v1437 = vadd.f32 %v1394, %v1436
    %v1438 = vpop.f32.mrf.mxu0
    %v1439 = vadd.f32 %v1396, %v1438
    %1440 = vdwg.mxu0
    %v1441 = vmul.f32 %v1347, 0.2
    %v1442 = vmul.f32 %v1349, 0.2
    %v1443 = vmul.f32 %v1433, 0.2
    %v1444 = vmul.f32 %v1435, 0.2
    %v1445 = vmul.f32 %v1351, 0.2
    %v1446 = vmul.f32 %v1353, 0.2
    %v1447 = vmul.f32 %v1437, 0.2
    %v1448 = vmul.f32 %v1439, 0.2
    %v1449 = vmax.f32 %v1347, %v1441
    %v1450 = vmax.f32 %v1349, %v1442
    %v1451 = vmax.f32 %v1433, %v1443
    %v1452 = vmax.f32 %v1435, %v1444
    %v1453 = vmax.f32 %v1351, %v1445
    %v1454 = vmax.f32 %v1353, %v1446
    %v1455 = vmax.f32 %v1437, %v1447
    %v1456 = vmax.f32 %v1439, %v1448
    %v1457 = vpack.c.bf16 %v1453, %v1449
    %v1458 = vpack.c.bf16 %v1454, %v1450
    %v1459 = vpack.c.bf16 %v1455, %v1451
    %v1460 = vpack.c.bf16 %v1456, %v1452
    %v1461 = vld [vmem:[%s5] sm:$0xff]
    %v1462 = vld [vmem:[%s5 + $0x8] sm:$0xff]
    %v1463 = vld [vmem:[%s5 + $0x10] sm:$0xff]
    %v1464 = vld [vmem:[%s5 + $0x18] sm:$0xf]
    %v1465 = vld [vmem:[%s5 + $0x1c] sm:$0xff]
    %v1466 = vld [vmem:[%s5 + $0x24] sm:$0xff]
    %v1467 = vld [vmem:[%s5 + $0x2c] sm:$0xff]
    %v1468 = vld [vmem:[%s5 + $0x34] sm:$0xf]
    %v1469 = vld [vmem:[%s5 + $0x38] sm:$0xff]
    %v1470 = vld [vmem:[%s5 + $0x40] sm:$0xff]
    %v1471 = vld [vmem:[%s5 + $0x48] sm:$0xff]
    %v1472 = vld [vmem:[%s5 + $0x50] sm:$0xf]
    %v1473 = vld [vmem:[%s5 + $0x54] sm:$0xff]
    %v1474 = vld [vmem:[%s5 + $0x5c] sm:$0xff]
    %v1475 = vld [vmem:[%s5 + $0x64] sm:$0xff]
    %v1476 = vld [vmem:[%s5 + $0x6c] sm:$0xf]
    %v1477 = vld [vmem:[%s5 + $0x70] sm:$0xff]
    %v1478 = vld [vmem:[%s5 + $0x78] sm:$0xff]
    %v1479 = vld [vmem:[%s5 + $0x80] sm:$0xff]
    %v1480 = vld [vmem:[%s5 + $0x88] sm:$0xf]
    %v1481 = vld [vmem:[%s5 + $0x8c] sm:$0xff]
    %v1482 = vld [vmem:[%s5 + $0x94] sm:$0xff]
    %v1483 = vld [vmem:[%s5 + $0x9c] sm:$0xff]
    %v1484 = vld [vmem:[%s5 + $0xa4] sm:$0xf]
    %v1485 = vld [vmem:[%s5 + $0xa8] sm:$0xff]
    %v1486 = vld [vmem:[%s5 + $0xb0] sm:$0xff]
    %v1487 = vld [vmem:[%s5 + $0xb8] sm:$0xff]
    %v1488 = vld [vmem:[%s5 + $0xc0] sm:$0xf]
    %v1489 = vld [vmem:[%s5 + $0xc4] sm:$0xff]
    %v1490 = vld [vmem:[%s5 + $0xcc] sm:$0xff]
    %v1491 = vld [vmem:[%s5 + $0xd4] sm:$0xff]
    %v1492 = vld [vmem:[%s5 + $0xdc] sm:$0xf]
    %v1493 = vld [vmem:[%s5 + $0xe0] sm:$0xff]
    %v1494 = vld [vmem:[%s5 + $0xe8] sm:$0xff]
    %v1495 = vld [vmem:[%s5 + $0xf0] sm:$0xff]
    %v1496 = vld [vmem:[%s5 + $0xf8] sm:$0xf]
    %v1497 = vld [vmem:[%s5 + $0xfc] sm:$0xff]
    %v1498 = vld [vmem:[%s5 + $0x104] sm:$0xff]
    %v1499 = vld [vmem:[%s5 + $0x10c] sm:$0xff]
    %v1500 = vld [vmem:[%s5 + $0x114] sm:$0xf]
    %v1501 = vld [vmem:[%s5 + $0x118] sm:$0xff]
    %v1502 = vld [vmem:[%s5 + $0x120] sm:$0xff]
    %v1503 = vld [vmem:[%s5 + $0x128] sm:$0xff]
    %v1504 = vld [vmem:[%s5 + $0x130] sm:$0xf]
    %v1505 = vld [vmem:[%s5 + $0x134] sm:$0xff]
    %v1506 = vld [vmem:[%s5 + $0x13c] sm:$0xff]
    %v1507 = vld [vmem:[%s5 + $0x144] sm:$0xff]
    %v1508 = vld [vmem:[%s5 + $0x14c] sm:$0xf]
    %v1509 = vld [vmem:[%s5 + $0x150] sm:$0xff]
    %v1510 = vld [vmem:[%s5 + $0x158] sm:$0xff]
    %v1511 = vld [vmem:[%s5 + $0x160] sm:$0xff]
    %v1512 = vld [vmem:[%s5 + $0x168] sm:$0xf]
    %v1513 = vld [vmem:[%s5 + $0x16c] sm:$0xff]
    %v1514 = vld [vmem:[%s5 + $0x174] sm:$0xff]
    %v1515 = vld [vmem:[%s5 + $0x17c] sm:$0xff]
    %v1516 = vld [vmem:[%s5 + $0x184] sm:$0xf]
    %v1517 = vld [vmem:[%s5 + $0x188] sm:$0xff]
    %v1518 = vld [vmem:[%s5 + $0x190] sm:$0xff]
    %v1519 = vld [vmem:[%s5 + $0x198] sm:$0xff]
    %v1520 = vld [vmem:[%s5 + $0x1a0] sm:$0xf]
    %v1521 = vld [vmem:[%s5 + $0x1a4] sm:$0xff]
    %v1522 = vld [vmem:[%s5 + $0x1ac] sm:$0xff]
    %v1523 = vld [vmem:[%s5 + $0x1b4] sm:$0xff]
    %v1524 = vld [vmem:[%s5 + $0x1bc] sm:$0xf]
    %v1525 = vld [vmem:[%s5 + $0x1c0] sm:$0xff]
    %v1526 = vld [vmem:[%s5 + $0x1c8] sm:$0xff]
    %v1527 = vld [vmem:[%s5 + $0x1d0] sm:$0xff]
    %v1528 = vld [vmem:[%s5 + $0x1d8] sm:$0xf]
    %v1529 = vld [vmem:[%s5 + $0x1dc] sm:$0xff]
    %v1530 = vld [vmem:[%s5 + $0x1e4] sm:$0xff]
    %v1531 = vld [vmem:[%s5 + $0x1ec] sm:$0xff]
    %v1532 = vld [vmem:[%s5 + $0x1f4] sm:$0xf]
    %v1533 = vld [vmem:[%s5 + $0x1f8] sm:$0xff]
    %v1534 = vld [vmem:[%s5 + $0x200] sm:$0xff]
    %v1535 = vld [vmem:[%s5 + $0x208] sm:$0xff]
    %v1536 = vld [vmem:[%s5 + $0x210] sm:$0xf]
    %v1537 = vld [vmem:[%s5 + $0x214] sm:$0xff]
    %v1538 = vld [vmem:[%s5 + $0x21c] sm:$0xff]
    %v1539 = vld [vmem:[%s5 + $0x224] sm:$0xff]
    %v1540 = vld [vmem:[%s5 + $0x22c] sm:$0xf]
    %v1541 = vld [vmem:[%s5 + $0x230] sm:$0xff]
    %v1542 = vld [vmem:[%s5 + $0x238] sm:$0xff]
    %v1543 = vld [vmem:[%s5 + $0x240] sm:$0xff]
    %v1544 = vld [vmem:[%s5 + $0x248] sm:$0xf]
    %v1545 = vld [vmem:[%s5 + $0x24c] sm:$0xff]
    %v1546 = vld [vmem:[%s5 + $0x254] sm:$0xff]
    %v1547 = vld [vmem:[%s5 + $0x25c] sm:$0xff]
    %v1548 = vld [vmem:[%s5 + $0x264] sm:$0xf]
    %v1549 = vld [vmem:[%s5 + $0x268] sm:$0xff]
    %v1550 = vld [vmem:[%s5 + $0x270] sm:$0xff]
    %v1551 = vld [vmem:[%s5 + $0x278] sm:$0xff]
    %v1552 = vld [vmem:[%s5 + $0x280] sm:$0xf]
    %v1553 = vld [vmem:[%s5 + $0x284] sm:$0xff]
    %v1554 = vld [vmem:[%s5 + $0x28c] sm:$0xff]
    %v1555 = vld [vmem:[%s5 + $0x294] sm:$0xff]
    %v1556 = vld [vmem:[%s5 + $0x29c] sm:$0xf]
    %v1557 = vld [vmem:[%s5 + $0x2a0] sm:$0xff]
    %v1558 = vld [vmem:[%s5 + $0x2a8] sm:$0xff]
    %v1559 = vld [vmem:[%s5 + $0x2b0] sm:$0xff]
    %v1560 = vld [vmem:[%s5 + $0x2b8] sm:$0xf]
    %v1561 = vld [vmem:[%s5 + $0x2bc] sm:$0xff]
    %v1562 = vld [vmem:[%s5 + $0x2c4] sm:$0xff]
    %v1563 = vld [vmem:[%s5 + $0x2cc] sm:$0xff]
    %v1564 = vld [vmem:[%s5 + $0x2d4] sm:$0xf]
    %v1565 = vld [vmem:[%s5 + $0x2d8] sm:$0xff]
    %v1566 = vld [vmem:[%s5 + $0x2e0] sm:$0xff]
    %v1567 = vld [vmem:[%s5 + $0x2e8] sm:$0xff]
    %v1568 = vld [vmem:[%s5 + $0x2f0] sm:$0xf]
    %v1569 = vld [vmem:[%s5 + $0x2f4] sm:$0xff]
    %v1570 = vld [vmem:[%s5 + $0x2fc] sm:$0xff]
    %v1571 = vld [vmem:[%s5 + $0x304] sm:$0xff]
    %v1572 = vld [vmem:[%s5 + $0x30c] sm:$0xf]
    %v1573 = vld [vmem:[%s5 + $0x310] sm:$0xff]
    %v1574 = vld [vmem:[%s5 + $0x318] sm:$0xff]
    %v1575 = vld [vmem:[%s5 + $0x320] sm:$0xff]
    %v1576 = vld [vmem:[%s5 + $0x328] sm:$0xf]
    %v1577 = vld [vmem:[%s5 + $0x32c] sm:$0xff]
    %v1578 = vld [vmem:[%s5 + $0x334] sm:$0xff]
    %v1579 = vld [vmem:[%s5 + $0x33c] sm:$0xff]
    %v1580 = vld [vmem:[%s5 + $0x344] sm:$0xf]
    %v1581 = vld [vmem:[%s5 + $0x348] sm:$0xff]
    %v1582 = vld [vmem:[%s5 + $0x350] sm:$0xff]
    %v1583 = vld [vmem:[%s5 + $0x358] sm:$0xff]
    %v1584 = vld [vmem:[%s5 + $0x360] sm:$0xf]
    %v1585 = vld [vmem:[%s5 + $0x364] sm:$0xff]
    %v1586 = vld [vmem:[%s5 + $0x36c] sm:$0xff]
    %v1587 = vld [vmem:[%s5 + $0x374] sm:$0xff]
    %v1588 = vld [vmem:[%s5 + $0x37c] sm:$0xf]
    %v1589 = vld [vmem:[%s5 + $0x380] sm:$0xff]
    %v1590 = vld [vmem:[%s5 + $0x388] sm:$0xff]
    %v1591 = vld [vmem:[%s5 + $0x390] sm:$0xff]
    %v1592 = vld [vmem:[%s5 + $0x398] sm:$0xf]
    %v1593 = vld [vmem:[%s5 + $0x39c] sm:$0xff]
    %v1594 = vld [vmem:[%s5 + $0x3a4] sm:$0xff]
    %v1595 = vld [vmem:[%s5 + $0x3ac] sm:$0xff]
    %v1596 = vld [vmem:[%s5 + $0x3b4] sm:$0xf]
    %v1597 = vld [vmem:[%s5 + $0x3b8] sm:$0xff]
    %v1598 = vld [vmem:[%s5 + $0x3c0] sm:$0xff]
    %v1599 = vld [vmem:[%s5 + $0x3c8] sm:$0xff]
    %v1600 = vld [vmem:[%s5 + $0x3d0] sm:$0xf]
    %v1601 = vld [vmem:[%s5 + $0x3d4] sm:$0xff]
    %v1602 = vld [vmem:[%s5 + $0x3dc] sm:$0xff]
    %v1603 = vld [vmem:[%s5 + $0x3e4] sm:$0xff]
    %v1604 = vld [vmem:[%s5 + $0x3ec] sm:$0xf]
    %v1605 = vld [vmem:[%s5 + $0x3f0] sm:$0xff]
    %v1606 = vld [vmem:[%s5 + $0x3f8] sm:$0xff]
    %v1607 = vld [vmem:[%s5 + $0x400] sm:$0xff]
    %v1608 = vld [vmem:[%s5 + $0x408] sm:$0xf]
    %v1609 = vld [vmem:[%s5 + $0x40c] sm:$0xff]
    %v1610 = vld [vmem:[%s5 + $0x414] sm:$0xff]
    %v1611 = vld [vmem:[%s5 + $0x41c] sm:$0xff]
    %v1612 = vld [vmem:[%s5 + $0x424] sm:$0xf]
    %v1613 = vld [vmem:[%s5 + $0x428] sm:$0xff]
    %v1614 = vld [vmem:[%s5 + $0x430] sm:$0xff]
    %v1615 = vld [vmem:[%s5 + $0x438] sm:$0xff]
    %v1616 = vld [vmem:[%s5 + $0x440] sm:$0xf]
    %v1617 = vld [vmem:[%s5 + $0x444] sm:$0xff]
    %v1618 = vld [vmem:[%s5 + $0x44c] sm:$0xff]
    %v1619 = vld [vmem:[%s5 + $0x454] sm:$0xff]
    %v1620 = vld [vmem:[%s5 + $0x45c] sm:$0xf]
    %v1621 = vld [vmem:[%s5 + $0x460] sm:$0xff]
    %v1622 = vld [vmem:[%s5 + $0x468] sm:$0xff]
    %v1623 = vld [vmem:[%s5 + $0x470] sm:$0xff]
    %v1624 = vld [vmem:[%s5 + $0x478] sm:$0xf]
    %v1625 = vld [vmem:[%s5 + $0x47c] sm:$0xff]
    %v1626 = vld [vmem:[%s5 + $0x484] sm:$0xff]
    %v1627 = vld [vmem:[%s5 + $0x48c] sm:$0xff]
    %v1628 = vld [vmem:[%s5 + $0x494] sm:$0xf]
    %v1629 = vld [vmem:[%s5 + $0x498] sm:$0xff]
    %v1630 = vld [vmem:[%s5 + $0x4a0] sm:$0xff]
    %v1631 = vld [vmem:[%s5 + $0x4a8] sm:$0xff]
    %v1632 = vld [vmem:[%s5 + $0x4b0] sm:$0xf]
    %v1633 = vld [vmem:[%s5 + $0x4b4] sm:$0xff]
    %v1634 = vld [vmem:[%s5 + $0x4bc] sm:$0xff]
    %v1635 = vld [vmem:[%s5 + $0x4c4] sm:$0xff]
    %v1636 = vld [vmem:[%s5 + $0x4cc] sm:$0xf]
    %v1637 = vld [vmem:[%s5 + $0x4d0] sm:$0xff]
    %v1638 = vld [vmem:[%s5 + $0x4d8] sm:$0xff]
    %v1639 = vld [vmem:[%s5 + $0x4e0] sm:$0xff]
    %v1640 = vld [vmem:[%s5 + $0x4e8] sm:$0xf]
    %v1641 = vld [vmem:[%s5 + $0x4ec] sm:$0xff]
    %v1642 = vld [vmem:[%s5 + $0x4f4] sm:$0xff]
    %v1643 = vld [vmem:[%s5 + $0x4fc] sm:$0xff]
    %v1644 = vld [vmem:[%s5 + $0x504] sm:$0xf]
    %v1645 = vld [vmem:[%s5 + $0x508] sm:$0xff]
    %v1646 = vld [vmem:[%s5 + $0x510] sm:$0xff]
    %v1647 = vld [vmem:[%s5 + $0x518] sm:$0xff]
    %v1648 = vld [vmem:[%s5 + $0x520] sm:$0xf]
    %v1649 = vld [vmem:[%s5 + $0x524] sm:$0xff]
    %v1650 = vld [vmem:[%s5 + $0x52c] sm:$0xff]
    %v1651 = vld [vmem:[%s5 + $0x534] sm:$0xff]
    %v1652 = vld [vmem:[%s5 + $0x53c] sm:$0xf]
    %v1653 = vld [vmem:[%s5 + $0x540] sm:$0xff]
    %v1654 = vld [vmem:[%s5 + $0x548] sm:$0xff]
    %v1655 = vld [vmem:[%s5 + $0x550] sm:$0xff]
    %v1656 = vld [vmem:[%s5 + $0x558] sm:$0xf]
    %v1657 = vld [vmem:[%s5 + $0x55c] sm:$0xff]
    %v1658 = vld [vmem:[%s5 + $0x564] sm:$0xff]
    %v1659 = vld [vmem:[%s5 + $0x56c] sm:$0xff]
    %v1660 = vld [vmem:[%s5 + $0x574] sm:$0xf]
    %v1661 = vld [vmem:[%s5 + $0x578] sm:$0xff]
    %v1662 = vld [vmem:[%s5 + $0x580] sm:$0xff]
    %v1663 = vld [vmem:[%s5 + $0x588] sm:$0xff]
    %v1664 = vld [vmem:[%s5 + $0x590] sm:$0xf]
    %v1665 = vld [vmem:[%s5 + $0x594] sm:$0xff]
    %v1666 = vld [vmem:[%s5 + $0x59c] sm:$0xff]
    %v1667 = vld [vmem:[%s5 + $0x5a4] sm:$0xff]
    %v1668 = vld [vmem:[%s5 + $0x5ac] sm:$0xf]
    %v1669 = vld [vmem:[%s5 + $0x5b0] sm:$0xff]
    %v1670 = vld [vmem:[%s5 + $0x5b8] sm:$0xff]
    %v1671 = vld [vmem:[%s5 + $0x5c0] sm:$0xff]
    %v1672 = vld [vmem:[%s5 + $0x5c8] sm:$0xf]
    %v1673 = vld [vmem:[%s5 + $0x5cc] sm:$0xff]
    %v1674 = vld [vmem:[%s5 + $0x5d4] sm:$0xff]
    %v1675 = vld [vmem:[%s5 + $0x5dc] sm:$0xff]
    %v1676 = vld [vmem:[%s5 + $0x5e4] sm:$0xf]
    %v1677 = vld [vmem:[%s5 + $0x5e8] sm:$0xff]
    %v1678 = vld [vmem:[%s5 + $0x5f0] sm:$0xff]
    %v1679 = vld [vmem:[%s5 + $0x5f8] sm:$0xff]
    %v1680 = vld [vmem:[%s5 + $0x600] sm:$0xf]
    %v1681 = vld [vmem:[%s5 + $0x604] sm:$0xff]
    %v1682 = vld [vmem:[%s5 + $0x60c] sm:$0xff]
    %v1683 = vld [vmem:[%s5 + $0x614] sm:$0xff]
    %v1684 = vld [vmem:[%s5 + $0x61c] sm:$0xf]
    %v1685 = vld [vmem:[%s5 + $0x620] sm:$0xff]
    %v1686 = vld [vmem:[%s5 + $0x628] sm:$0xff]
    %v1687 = vld [vmem:[%s5 + $0x630] sm:$0xff]
    %v1688 = vld [vmem:[%s5 + $0x638] sm:$0xf]
    %v1689 = vld [vmem:[%s5 + $0x63c] sm:$0xff]
    %v1690 = vld [vmem:[%s5 + $0x644] sm:$0xff]
    %v1691 = vld [vmem:[%s5 + $0x64c] sm:$0xff]
    %v1692 = vld [vmem:[%s5 + $0x654] sm:$0xf]
    %v1693 = vld [vmem:[%s5 + $0x658] sm:$0xff]
    %v1694 = vld [vmem:[%s5 + $0x660] sm:$0xff]
    %v1695 = vld [vmem:[%s5 + $0x668] sm:$0xff]
    %v1696 = vld [vmem:[%s5 + $0x670] sm:$0xf]
    %v1697 = vld [vmem:[%s5 + $0x674] sm:$0xff]
    %v1698 = vld [vmem:[%s5 + $0x67c] sm:$0xff]
    %v1699 = vld [vmem:[%s5 + $0x684] sm:$0xff]
    %v1700 = vld [vmem:[%s5 + $0x68c] sm:$0xf]
    %v1701 = vld [vmem:[%s5 + $0x690] sm:$0xff]
    %v1702 = vld [vmem:[%s5 + $0x698] sm:$0xff]
    %v1703 = vld [vmem:[%s5 + $0x6a0] sm:$0xff]
    %v1704 = vld [vmem:[%s5 + $0x6a8] sm:$0xf]
    %v1705 = vld [vmem:[%s5 + $0x6ac] sm:$0xff]
    %v1706 = vld [vmem:[%s5 + $0x6b4] sm:$0xff]
    %v1707 = vld [vmem:[%s5 + $0x6bc] sm:$0xff]
    %v1708 = vld [vmem:[%s5 + $0x6c4] sm:$0xf]
    %v1709 = vld [vmem:[%s5 + $0x6c8] sm:$0xff]
    %v1710 = vld [vmem:[%s5 + $0x6d0] sm:$0xff]
    %v1711 = vld [vmem:[%s5 + $0x6d8] sm:$0xff]
    %v1712 = vld [vmem:[%s5 + $0x6e0] sm:$0xf]
    %v1713 = vld [vmem:[%s5 + $0x6e4] sm:$0xff]
    %v1714 = vld [vmem:[%s5 + $0x6ec] sm:$0xff]
    %v1715 = vld [vmem:[%s5 + $0x6f4] sm:$0xff]
    %v1716 = vld [vmem:[%s5 + $0x6fc] sm:$0xf]
    %v1717 = vld [vmem:[%s6] sm:$0x7f]
    %v1719 = vlaneseq
    %v1720 = vshrl.u32 %v1719, 7
    %v1721 = vsub.s32 0, %v1720
    %v1722 = vrot.slane %v1717, %v1721
    %v1723 = vlaneseq
    %v1724 = vshrl.u32 %v1723, 7
    %v1725 = vsub.s32 1, %v1724
    %v1726 = vrot.slane %v1717, %v1725
    %v1727 = vlaneseq
    %v1728 = vshrl.u32 %v1727, 7
    %v1729 = vsub.s32 2, %v1728
    %v1730 = vrot.slane %v1717, %v1729
    %v1731 = vlaneseq
    %v1732 = vshrl.u32 %v1731, 7
    %v1733 = vsub.s32 3, %v1732
    %v1734 = vrot.slane %v1717, %v1733
    %v1735 = vlaneseq
    %v1736 = vshrl.u32 %v1735, 7
    %v1737 = vsub.s32 4, %v1736
    %v1738 = vrot.slane %v1717, %v1737
    %v1739 = vlaneseq
    %v1740 = vshrl.u32 %v1739, 7
    %v1741 = vsub.s32 5, %v1740
    %v1742 = vrot.slane %v1717, %v1741
    %v1743 = vlaneseq
    %v1744 = vshrl.u32 %v1743, 7
    %v1745 = vsub.s32 6, %v1744
    %v1746 = vrot.slane %v1717, %v1745
    %v2010 = vunpack.c.l.b16 %v1461
    %v2011 = vunpack.c.h.b16 %v1461
    %v2012 = vunpack.c.l.b16 %v1462
    %v2013 = vunpack.c.h.b16 %v1462
    %v2014 = vunpack.c.l.b16 %v1463
    %v2015 = vunpack.c.h.b16 %v1463
    %v2016 = vunpack.c.l.b16 %v1464
    %v2017 = vunpack.c.l.b16 %v1465
    %v2018 = vunpack.c.h.b16 %v1465
    %v2019 = vunpack.c.l.b16 %v1466
    %v2020 = vunpack.c.h.b16 %v1466
    %v2021 = vunpack.c.l.b16 %v1467
    %v2022 = vunpack.c.h.b16 %v1467
    %v2023 = vunpack.c.l.b16 %v1468
    %v2024 = vunpack.c.l.b16 %v1469
    %v2025 = vunpack.c.h.b16 %v1469
    %v2026 = vunpack.c.l.b16 %v1470
    %v2027 = vunpack.c.h.b16 %v1470
    %v2028 = vunpack.c.l.b16 %v1471
    %v2029 = vunpack.c.h.b16 %v1471
    %v2030 = vunpack.c.l.b16 %v1472
    %v2031 = vunpack.c.l.b16 %v1473
    %v2032 = vunpack.c.h.b16 %v1473
    %v2033 = vunpack.c.l.b16 %v1474
    %v2034 = vunpack.c.h.b16 %v1474
    %v2035 = vunpack.c.l.b16 %v1475
    %v2036 = vunpack.c.h.b16 %v1475
    %v2037 = vunpack.c.l.b16 %v1476
    %v2038 = vunpack.c.l.b16 %v1477
    %v2039 = vunpack.c.h.b16 %v1477
    %v2040 = vunpack.c.l.b16 %v1478
    %v2041 = vunpack.c.h.b16 %v1478
    %v2042 = vunpack.c.l.b16 %v1479
    %v2043 = vunpack.c.h.b16 %v1479
    %v2044 = vunpack.c.l.b16 %v1480
    %v2045 = vunpack.c.l.b16 %v1481
    %v2046 = vunpack.c.h.b16 %v1481
    %v2047 = vunpack.c.l.b16 %v1482
    %v2048 = vunpack.c.h.b16 %v1482
    %v2049 = vunpack.c.l.b16 %v1483
    %v2050 = vunpack.c.h.b16 %v1483
    %v2051 = vunpack.c.l.b16 %v1484
    %v2052 = vunpack.c.l.b16 %v1485
    %v2053 = vunpack.c.h.b16 %v1485
    %v2054 = vunpack.c.l.b16 %v1486
    %v2055 = vunpack.c.h.b16 %v1486
    %v2056 = vunpack.c.l.b16 %v1487
    %v2057 = vunpack.c.h.b16 %v1487
    %v2058 = vunpack.c.l.b16 %v1488
    %v2059 = vunpack.c.l.b16 %v1489
    %v2060 = vunpack.c.h.b16 %v1489
    %v2061 = vunpack.c.l.b16 %v1490
    %v2062 = vunpack.c.h.b16 %v1490
    %v2063 = vunpack.c.l.b16 %v1491
    %v2064 = vunpack.c.h.b16 %v1491
    %v2065 = vunpack.c.l.b16 %v1492
    %v2066 = vunpack.c.l.b16 %v1493
    %v2067 = vunpack.c.h.b16 %v1493
    %v2068 = vunpack.c.l.b16 %v1494
    %v2069 = vunpack.c.h.b16 %v1494
    %v2070 = vunpack.c.l.b16 %v1495
    %v2071 = vunpack.c.h.b16 %v1495
    %v2072 = vunpack.c.l.b16 %v1496
    %v2073 = vunpack.c.l.b16 %v1497
    %v2074 = vunpack.c.h.b16 %v1497
    %v2075 = vunpack.c.l.b16 %v1498
    %v2076 = vunpack.c.h.b16 %v1498
    %v2077 = vunpack.c.l.b16 %v1499
    %v2078 = vunpack.c.h.b16 %v1499
    %v2079 = vunpack.c.l.b16 %v1500
    %v2080 = vunpack.c.l.b16 %v1501
    %v2081 = vunpack.c.h.b16 %v1501
    %v2082 = vunpack.c.l.b16 %v1502
    %v2083 = vunpack.c.h.b16 %v1502
    %v2084 = vunpack.c.l.b16 %v1503
    %v2085 = vunpack.c.h.b16 %v1503
    %v2086 = vunpack.c.l.b16 %v1504
    %v2087 = vunpack.c.l.b16 %v1505
    %v2088 = vunpack.c.h.b16 %v1505
    %v2089 = vunpack.c.l.b16 %v1506
    %v2090 = vunpack.c.h.b16 %v1506
    %v2091 = vunpack.c.l.b16 %v1507
    %v2092 = vunpack.c.h.b16 %v1507
    %v2093 = vunpack.c.l.b16 %v1508
    %v2094 = vunpack.c.l.b16 %v1509
    %v2095 = vunpack.c.h.b16 %v1509
    %v2096 = vunpack.c.l.b16 %v1510
    %v2097 = vunpack.c.h.b16 %v1510
    %v2098 = vunpack.c.l.b16 %v1511
    %v2099 = vunpack.c.h.b16 %v1511
    %v2100 = vunpack.c.l.b16 %v1512
    %v2101 = vunpack.c.l.b16 %v1513
    %v2102 = vunpack.c.h.b16 %v1513
    %v2103 = vunpack.c.l.b16 %v1514
    %v2104 = vunpack.c.h.b16 %v1514
    %v2105 = vunpack.c.l.b16 %v1515
    %v2106 = vunpack.c.h.b16 %v1515
    %v2107 = vunpack.c.l.b16 %v1516
    %v2108 = vunpack.c.l.b16 %v1517
    %v2109 = vunpack.c.h.b16 %v1517
    %v2110 = vunpack.c.l.b16 %v1518
    %v2111 = vunpack.c.h.b16 %v1518
    %v2112 = vunpack.c.l.b16 %v1519
    %v2113 = vunpack.c.h.b16 %v1519
    %v2114 = vunpack.c.l.b16 %v1520
    %v2115 = vunpack.c.l.b16 %v1521
    %v2116 = vunpack.c.h.b16 %v1521
    %v2117 = vunpack.c.l.b16 %v1522
    %v2118 = vunpack.c.h.b16 %v1522
    %v2119 = vunpack.c.l.b16 %v1523
    %v2120 = vunpack.c.h.b16 %v1523
    %v2121 = vunpack.c.l.b16 %v1524
    %v2122 = vunpack.c.l.b16 %v1525
    %v2123 = vunpack.c.h.b16 %v1525
    %v2124 = vunpack.c.l.b16 %v1526
    %v2125 = vunpack.c.h.b16 %v1526
    %v2126 = vunpack.c.l.b16 %v1527
    %v2127 = vunpack.c.h.b16 %v1527
    %v2128 = vunpack.c.l.b16 %v1528
    %v2129 = vunpack.c.l.b16 %v1529
    %v2130 = vunpack.c.h.b16 %v1529
    %v2131 = vunpack.c.l.b16 %v1530
    %v2132 = vunpack.c.h.b16 %v1530
    %v2133 = vunpack.c.l.b16 %v1531
    %v2134 = vunpack.c.h.b16 %v1531
    %v2135 = vunpack.c.l.b16 %v1532
    %v2136 = vunpack.c.l.b16 %v1533
    %v2137 = vunpack.c.h.b16 %v1533
    %v2138 = vunpack.c.l.b16 %v1534
    %v2139 = vunpack.c.h.b16 %v1534
    %v2140 = vunpack.c.l.b16 %v1535
    %v2141 = vunpack.c.h.b16 %v1535
    %v2142 = vunpack.c.l.b16 %v1536
    %v2143 = vunpack.c.l.b16 %v1537
    %v2144 = vunpack.c.h.b16 %v1537
    %v2145 = vunpack.c.l.b16 %v1538
    %v2146 = vunpack.c.h.b16 %v1538
    %v2147 = vunpack.c.l.b16 %v1539
    %v2148 = vunpack.c.h.b16 %v1539
    %v2149 = vunpack.c.l.b16 %v1540
    %v2150 = vunpack.c.l.b16 %v1541
    %v2151 = vunpack.c.h.b16 %v1541
    %v2152 = vunpack.c.l.b16 %v1542
    %v2153 = vunpack.c.h.b16 %v1542
    %v2154 = vunpack.c.l.b16 %v1543
    %v2155 = vunpack.c.h.b16 %v1543
    %v2156 = vunpack.c.l.b16 %v1544
    %v2157 = vunpack.c.l.b16 %v1545
    %v2158 = vunpack.c.h.b16 %v1545
    %v2159 = vunpack.c.l.b16 %v1546
    %v2160 = vunpack.c.h.b16 %v1546
    %v2161 = vunpack.c.l.b16 %v1547
    %v2162 = vunpack.c.h.b16 %v1547
    %v2163 = vunpack.c.l.b16 %v1548
    %v2164 = vunpack.c.l.b16 %v1549
    %v2165 = vunpack.c.h.b16 %v1549
    %v2166 = vunpack.c.l.b16 %v1550
    %v2167 = vunpack.c.h.b16 %v1550
    %v2168 = vunpack.c.l.b16 %v1551
    %v2169 = vunpack.c.h.b16 %v1551
    %v2170 = vunpack.c.l.b16 %v1552
    %v2171 = vunpack.c.l.b16 %v1553
    %v2172 = vunpack.c.h.b16 %v1553
    %v2173 = vunpack.c.l.b16 %v1554
    %v2174 = vunpack.c.h.b16 %v1554
    %v2175 = vunpack.c.l.b16 %v1555
    %v2176 = vunpack.c.h.b16 %v1555
    %v2177 = vunpack.c.l.b16 %v1556
    %v2178 = vunpack.c.l.b16 %v1557
    %v2179 = vunpack.c.h.b16 %v1557
    %v2180 = vunpack.c.l.b16 %v1558
    %v2181 = vunpack.c.h.b16 %v1558
    %v2182 = vunpack.c.l.b16 %v1559
    %v2183 = vunpack.c.h.b16 %v1559
    %v2184 = vunpack.c.l.b16 %v1560
    %v2185 = vunpack.c.l.b16 %v1561
    %v2186 = vunpack.c.h.b16 %v1561
    %v2187 = vunpack.c.l.b16 %v1562
    %v2188 = vunpack.c.h.b16 %v1562
    %v2189 = vunpack.c.l.b16 %v1563
    %v2190 = vunpack.c.h.b16 %v1563
    %v2191 = vunpack.c.l.b16 %v1564
    %v2192 = vunpack.c.l.b16 %v1565
    %v2193 = vunpack.c.h.b16 %v1565
    %v2194 = vunpack.c.l.b16 %v1566
    %v2195 = vunpack.c.h.b16 %v1566
    %v2196 = vunpack.c.l.b16 %v1567
    %v2197 = vunpack.c.h.b16 %v1567
    %v2198 = vunpack.c.l.b16 %v1568
    %v2199 = vunpack.c.l.b16 %v1569
    %v2200 = vunpack.c.h.b16 %v1569
    %v2201 = vunpack.c.l.b16 %v1570
    %v2202 = vunpack.c.h.b16 %v1570
    %v2203 = vunpack.c.l.b16 %v1571
    %v2204 = vunpack.c.h.b16 %v1571
    %v2205 = vunpack.c.l.b16 %v1572
    %v2206 = vunpack.c.l.b16 %v1573
    %v2207 = vunpack.c.h.b16 %v1573
    %v2208 = vunpack.c.l.b16 %v1574
    %v2209 = vunpack.c.h.b16 %v1574
    %v2210 = vunpack.c.l.b16 %v1575
    %v2211 = vunpack.c.h.b16 %v1575
    %v2212 = vunpack.c.l.b16 %v1576
    %v2213 = vunpack.c.l.b16 %v1577
    %v2214 = vunpack.c.h.b16 %v1577
    %v2215 = vunpack.c.l.b16 %v1578
    %v2216 = vunpack.c.h.b16 %v1578
    %v2217 = vunpack.c.l.b16 %v1579
    %v2218 = vunpack.c.h.b16 %v1579
    %v2219 = vunpack.c.l.b16 %v1580
    %v2220 = vunpack.c.l.b16 %v1581
    %v2221 = vunpack.c.h.b16 %v1581
    %v2222 = vunpack.c.l.b16 %v1582
    %v2223 = vunpack.c.h.b16 %v1582
    %v2224 = vunpack.c.l.b16 %v1583
    %v2225 = vunpack.c.h.b16 %v1583
    %v2226 = vunpack.c.l.b16 %v1584
    %v2227 = vunpack.c.l.b16 %v1585
    %v2228 = vunpack.c.h.b16 %v1585
    %v2229 = vunpack.c.l.b16 %v1586
    %v2230 = vunpack.c.h.b16 %v1586
    %v2231 = vunpack.c.l.b16 %v1587
    %v2232 = vunpack.c.h.b16 %v1587
    %v2233 = vunpack.c.l.b16 %v1588
    %v2234 = vunpack.c.l.b16 %v1589
    %v2235 = vunpack.c.h.b16 %v1589
    %v2236 = vunpack.c.l.b16 %v1590
    %v2237 = vunpack.c.h.b16 %v1590
    %v2238 = vunpack.c.l.b16 %v1591
    %v2239 = vunpack.c.h.b16 %v1591
    %v2240 = vunpack.c.l.b16 %v1592
    %v2241 = vunpack.c.l.b16 %v1593
    %v2242 = vunpack.c.h.b16 %v1593
    %v2243 = vunpack.c.l.b16 %v1594
    %v2244 = vunpack.c.h.b16 %v1594
    %v2245 = vunpack.c.l.b16 %v1595
    %v2246 = vunpack.c.h.b16 %v1595
    %v2247 = vunpack.c.l.b16 %v1596
    %v2248 = vunpack.c.l.b16 %v1597
    %v2249 = vunpack.c.h.b16 %v1597
    %v2250 = vunpack.c.l.b16 %v1598
    %v2251 = vunpack.c.h.b16 %v1598
    %v2252 = vunpack.c.l.b16 %v1599
    %v2253 = vunpack.c.h.b16 %v1599
    %v2254 = vunpack.c.l.b16 %v1600
    %v2255 = vunpack.c.l.b16 %v1601
    %v2256 = vunpack.c.h.b16 %v1601
    %v2257 = vunpack.c.l.b16 %v1602
    %v2258 = vunpack.c.h.b16 %v1602
    %v2259 = vunpack.c.l.b16 %v1603
    %v2260 = vunpack.c.h.b16 %v1603
    %v2261 = vunpack.c.l.b16 %v1604
    %v2262 = vunpack.c.l.b16 %v1605
    %v2263 = vunpack.c.h.b16 %v1605
    %v2264 = vunpack.c.l.b16 %v1606
    %v2265 = vunpack.c.h.b16 %v1606
    %v2266 = vunpack.c.l.b16 %v1607
    %v2267 = vunpack.c.h.b16 %v1607
    %v2268 = vunpack.c.l.b16 %v1608
    %v2269 = vunpack.c.l.b16 %v1609
    %v2270 = vunpack.c.h.b16 %v1609
    %v2271 = vunpack.c.l.b16 %v1610
    %v2272 = vunpack.c.h.b16 %v1610
    %v2273 = vunpack.c.l.b16 %v1611
    %v2274 = vunpack.c.h.b16 %v1611
    %v2275 = vunpack.c.l.b16 %v1612
    %v2276 = vunpack.c.l.b16 %v1613
    %v2277 = vunpack.c.h.b16 %v1613
    %v2278 = vunpack.c.l.b16 %v1614
    %v2279 = vunpack.c.h.b16 %v1614
    %v2280 = vunpack.c.l.b16 %v1615
    %v2281 = vunpack.c.h.b16 %v1615
    %v2282 = vunpack.c.l.b16 %v1616
    %v2283 = vunpack.c.l.b16 %v1617
    %v2284 = vunpack.c.h.b16 %v1617
    %v2285 = vunpack.c.l.b16 %v1618
    %v2286 = vunpack.c.h.b16 %v1618
    %v2287 = vunpack.c.l.b16 %v1619
    %v2288 = vunpack.c.h.b16 %v1619
    %v2289 = vunpack.c.l.b16 %v1620
    %v2290 = vunpack.c.l.b16 %v1621
    %v2291 = vunpack.c.h.b16 %v1621
    %v2292 = vunpack.c.l.b16 %v1622
    %v2293 = vunpack.c.h.b16 %v1622
    %v2294 = vunpack.c.l.b16 %v1623
    %v2295 = vunpack.c.h.b16 %v1623
    %v2296 = vunpack.c.l.b16 %v1624
    %v2297 = vunpack.c.l.b16 %v1625
    %v2298 = vunpack.c.h.b16 %v1625
    %v2299 = vunpack.c.l.b16 %v1626
    %v2300 = vunpack.c.h.b16 %v1626
    %v2301 = vunpack.c.l.b16 %v1627
    %v2302 = vunpack.c.h.b16 %v1627
    %v2303 = vunpack.c.l.b16 %v1628
    %v2304 = vunpack.c.l.b16 %v1629
    %v2305 = vunpack.c.h.b16 %v1629
    %v2306 = vunpack.c.l.b16 %v1630
    %v2307 = vunpack.c.h.b16 %v1630
    %v2308 = vunpack.c.l.b16 %v1631
    %v2309 = vunpack.c.h.b16 %v1631
    %v2310 = vunpack.c.l.b16 %v1632
    %v2311 = vunpack.c.l.b16 %v1633
    %v2312 = vunpack.c.h.b16 %v1633
    %v2313 = vunpack.c.l.b16 %v1634
    %v2314 = vunpack.c.h.b16 %v1634
    %v2315 = vunpack.c.l.b16 %v1635
    %v2316 = vunpack.c.h.b16 %v1635
    %v2317 = vunpack.c.l.b16 %v1636
    %v2318 = vunpack.c.l.b16 %v1637
    %v2319 = vunpack.c.h.b16 %v1637
    %v2320 = vunpack.c.l.b16 %v1638
    %v2321 = vunpack.c.h.b16 %v1638
    %v2322 = vunpack.c.l.b16 %v1639
    %v2323 = vunpack.c.h.b16 %v1639
    %v2324 = vunpack.c.l.b16 %v1640
    %v2325 = vunpack.c.l.b16 %v1641
    %v2326 = vunpack.c.h.b16 %v1641
    %v2327 = vunpack.c.l.b16 %v1642
    %v2328 = vunpack.c.h.b16 %v1642
    %v2329 = vunpack.c.l.b16 %v1643
    %v2330 = vunpack.c.h.b16 %v1643
    %v2331 = vunpack.c.l.b16 %v1644
    %v2332 = vunpack.c.l.b16 %v1645
    %v2333 = vunpack.c.h.b16 %v1645
    %v2334 = vunpack.c.l.b16 %v1646
    %v2335 = vunpack.c.h.b16 %v1646
    %v2336 = vunpack.c.l.b16 %v1647
    %v2337 = vunpack.c.h.b16 %v1647
    %v2338 = vunpack.c.l.b16 %v1648
    %v2339 = vunpack.c.l.b16 %v1649
    %v2340 = vunpack.c.h.b16 %v1649
    %v2341 = vunpack.c.l.b16 %v1650
    %v2342 = vunpack.c.h.b16 %v1650
    %v2343 = vunpack.c.l.b16 %v1651
    %v2344 = vunpack.c.h.b16 %v1651
    %v2345 = vunpack.c.l.b16 %v1652
    %v2346 = vunpack.c.l.b16 %v1653
    %v2347 = vunpack.c.h.b16 %v1653
    %v2348 = vunpack.c.l.b16 %v1654
    %v2349 = vunpack.c.h.b16 %v1654
    %v2350 = vunpack.c.l.b16 %v1655
    %v2351 = vunpack.c.h.b16 %v1655
    %v2352 = vunpack.c.l.b16 %v1656
    %v2353 = vunpack.c.l.b16 %v1657
    %v2354 = vunpack.c.h.b16 %v1657
    %v2355 = vunpack.c.l.b16 %v1658
    %v2356 = vunpack.c.h.b16 %v1658
    %v2357 = vunpack.c.l.b16 %v1659
    %v2358 = vunpack.c.h.b16 %v1659
    %v2359 = vunpack.c.l.b16 %v1660
    %v2360 = vunpack.c.l.b16 %v1661
    %v2361 = vunpack.c.h.b16 %v1661
    %v2362 = vunpack.c.l.b16 %v1662
    %v2363 = vunpack.c.h.b16 %v1662
    %v2364 = vunpack.c.l.b16 %v1663
    %v2365 = vunpack.c.h.b16 %v1663
    %v2366 = vunpack.c.l.b16 %v1664
    %v2367 = vunpack.c.l.b16 %v1665
    %v2368 = vunpack.c.h.b16 %v1665
    %v2369 = vunpack.c.l.b16 %v1666
    %v2370 = vunpack.c.h.b16 %v1666
    %v2371 = vunpack.c.l.b16 %v1667
    %v2372 = vunpack.c.h.b16 %v1667
    %v2373 = vunpack.c.l.b16 %v1668
    %v2374 = vunpack.c.l.b16 %v1669
    %v2375 = vunpack.c.h.b16 %v1669
    %v2376 = vunpack.c.l.b16 %v1670
    %v2377 = vunpack.c.h.b16 %v1670
    %v2378 = vunpack.c.l.b16 %v1671
    %v2379 = vunpack.c.h.b16 %v1671
    %v2380 = vunpack.c.l.b16 %v1672
    %v2381 = vunpack.c.l.b16 %v1673
    %v2382 = vunpack.c.h.b16 %v1673
    %v2383 = vunpack.c.l.b16 %v1674
    %v2384 = vunpack.c.h.b16 %v1674
    %v2385 = vunpack.c.l.b16 %v1675
    %v2386 = vunpack.c.h.b16 %v1675
    %v2387 = vunpack.c.l.b16 %v1676
    %v2388 = vunpack.c.l.b16 %v1677
    %v2389 = vunpack.c.h.b16 %v1677
    %v2390 = vunpack.c.l.b16 %v1678
    %v2391 = vunpack.c.h.b16 %v1678
    %v2392 = vunpack.c.l.b16 %v1679
    %v2393 = vunpack.c.h.b16 %v1679
    %v2394 = vunpack.c.l.b16 %v1680
    %v2395 = vunpack.c.l.b16 %v1681
    %v2396 = vunpack.c.h.b16 %v1681
    %v2397 = vunpack.c.l.b16 %v1682
    %v2398 = vunpack.c.h.b16 %v1682
    %v2399 = vunpack.c.l.b16 %v1683
    %v2400 = vunpack.c.h.b16 %v1683
    %v2401 = vunpack.c.l.b16 %v1684
    %v2402 = vunpack.c.l.b16 %v1685
    %v2403 = vunpack.c.h.b16 %v1685
    %v2404 = vunpack.c.l.b16 %v1686
    %v2405 = vunpack.c.h.b16 %v1686
    %v2406 = vunpack.c.l.b16 %v1687
    %v2407 = vunpack.c.h.b16 %v1687
    %v2408 = vunpack.c.l.b16 %v1688
    %v2409 = vunpack.c.l.b16 %v1689
    %v2410 = vunpack.c.h.b16 %v1689
    %v2411 = vunpack.c.l.b16 %v1690
    %v2412 = vunpack.c.h.b16 %v1690
    %v2413 = vunpack.c.l.b16 %v1691
    %v2414 = vunpack.c.h.b16 %v1691
    %v2415 = vunpack.c.l.b16 %v1692
    %v2416 = vunpack.c.l.b16 %v1693
    %v2417 = vunpack.c.h.b16 %v1693
    %v2418 = vunpack.c.l.b16 %v1694
    %v2419 = vunpack.c.h.b16 %v1694
    %v2420 = vunpack.c.l.b16 %v1695
    %v2421 = vunpack.c.h.b16 %v1695
    %v2422 = vunpack.c.l.b16 %v1696
    %v2423 = vunpack.c.l.b16 %v1697
    %v2424 = vunpack.c.h.b16 %v1697
    %v2425 = vunpack.c.l.b16 %v1698
    %v2426 = vunpack.c.h.b16 %v1698
    %v2427 = vunpack.c.l.b16 %v1699
    %v2428 = vunpack.c.h.b16 %v1699
    %v2429 = vunpack.c.l.b16 %v1700
    %v2430 = vunpack.c.l.b16 %v1701
    %v2431 = vunpack.c.h.b16 %v1701
    %v2432 = vunpack.c.l.b16 %v1702
    %v2433 = vunpack.c.h.b16 %v1702
    %v2434 = vunpack.c.l.b16 %v1703
    %v2435 = vunpack.c.h.b16 %v1703
    %v2436 = vunpack.c.l.b16 %v1704
    %v2437 = vunpack.c.l.b16 %v1705
    %v2438 = vunpack.c.h.b16 %v1705
    %v2439 = vunpack.c.l.b16 %v1706
    %v2440 = vunpack.c.h.b16 %v1706
    %v2441 = vunpack.c.l.b16 %v1707
    %v2442 = vunpack.c.h.b16 %v1707
    %v2443 = vunpack.c.l.b16 %v1708
    %v2444 = vunpack.c.l.b16 %v1709
    %v2445 = vunpack.c.h.b16 %v1709
    %v2446 = vunpack.c.l.b16 %v1710
    %v2447 = vunpack.c.h.b16 %v1710
    %v2448 = vunpack.c.l.b16 %v1711
    %v2449 = vunpack.c.h.b16 %v1711
    %v2450 = vunpack.c.l.b16 %v1712
    %v2451 = vunpack.c.l.b16 %v1713
    %v2452 = vunpack.c.h.b16 %v1713
    %v2453 = vunpack.c.l.b16 %v1714
    %v2454 = vunpack.c.h.b16 %v1714
    %v2455 = vunpack.c.l.b16 %v1715
    %v2456 = vunpack.c.h.b16 %v1715
    %v2457 = vunpack.c.l.b16 %v1716
    %v2458 = vpack.c.b16 %v2017, %v2010
    %v2459 = vpack.c.b16 %v2018, %v2011
    %v2460 = vpack.c.b16 %v2019, %v2012
    %v2461 = vpack.c.b16 %v2020, %v2013
    %v2462 = vpack.c.b16 %v2021, %v2014
    %v2463 = vpack.c.b16 %v2022, %v2015
    %v2464 = vpack.c.b16 %v2023, %v2016
    %v2465 = vpack.c.b16 %v2031, %v2024
    %v2466 = vpack.c.b16 %v2032, %v2025
    %v2467 = vpack.c.b16 %v2033, %v2026
    %v2468 = vpack.c.b16 %v2034, %v2027
    %v2469 = vpack.c.b16 %v2035, %v2028
    %v2470 = vpack.c.b16 %v2036, %v2029
    %v2471 = vpack.c.b16 %v2037, %v2030
    %v2472 = vpack.c.b16 %v2045, %v2038
    %v2473 = vpack.c.b16 %v2046, %v2039
    %v2474 = vpack.c.b16 %v2047, %v2040
    %v2475 = vpack.c.b16 %v2048, %v2041
    %v2476 = vpack.c.b16 %v2049, %v2042
    %v2477 = vpack.c.b16 %v2050, %v2043
    %v2478 = vpack.c.b16 %v2051, %v2044
    %v2479 = vpack.c.b16 %v2059, %v2052
    %v2480 = vpack.c.b16 %v2060, %v2053
    %v2481 = vpack.c.b16 %v2061, %v2054
    %v2482 = vpack.c.b16 %v2062, %v2055
    %v2483 = vpack.c.b16 %v2063, %v2056
    %v2484 = vpack.c.b16 %v2064, %v2057
    %v2485 = vpack.c.b16 %v2065, %v2058
    %v2486 = vpack.c.b16 %v2073, %v2066
    %v2487 = vpack.c.b16 %v2074, %v2067
    %v2488 = vpack.c.b16 %v2075, %v2068
    %v2489 = vpack.c.b16 %v2076, %v2069
    %v2490 = vpack.c.b16 %v2077, %v2070
    %v2491 = vpack.c.b16 %v2078, %v2071
    %v2492 = vpack.c.b16 %v2079, %v2072
    %v2493 = vpack.c.b16 %v2087, %v2080
    %v2494 = vpack.c.b16 %v2088, %v2081
    %v2495 = vpack.c.b16 %v2089, %v2082
    %v2496 = vpack.c.b16 %v2090, %v2083
    %v2497 = vpack.c.b16 %v2091, %v2084
    %v2498 = vpack.c.b16 %v2092, %v2085
    %v2499 = vpack.c.b16 %v2093, %v2086
    %v2500 = vpack.c.b16 %v2101, %v2094
    %v2501 = vpack.c.b16 %v2102, %v2095
    %v2502 = vpack.c.b16 %v2103, %v2096
    %v2503 = vpack.c.b16 %v2104, %v2097
    %v2504 = vpack.c.b16 %v2105, %v2098
    %v2505 = vpack.c.b16 %v2106, %v2099
    %v2506 = vpack.c.b16 %v2107, %v2100
    %v2507 = vpack.c.b16 %v2115, %v2108
    %v2508 = vpack.c.b16 %v2116, %v2109
    %v2509 = vpack.c.b16 %v2117, %v2110
    %v2510 = vpack.c.b16 %v2118, %v2111
    %v2511 = vpack.c.b16 %v2119, %v2112
    %v2512 = vpack.c.b16 %v2120, %v2113
    %v2513 = vpack.c.b16 %v2121, %v2114
    %v2514 = vpack.c.b16 %v2129, %v2122
    %v2515 = vpack.c.b16 %v2130, %v2123
    %v2516 = vpack.c.b16 %v2131, %v2124
    %v2517 = vpack.c.b16 %v2132, %v2125
    %v2518 = vpack.c.b16 %v2133, %v2126
    %v2519 = vpack.c.b16 %v2134, %v2127
    %v2520 = vpack.c.b16 %v2135, %v2128
    %v2521 = vpack.c.b16 %v2143, %v2136
    %v2522 = vpack.c.b16 %v2144, %v2137
    %v2523 = vpack.c.b16 %v2145, %v2138
    %v2524 = vpack.c.b16 %v2146, %v2139
    %v2525 = vpack.c.b16 %v2147, %v2140
    %v2526 = vpack.c.b16 %v2148, %v2141
    %v2527 = vpack.c.b16 %v2149, %v2142
    %v2528 = vpack.c.b16 %v2157, %v2150
    %v2529 = vpack.c.b16 %v2158, %v2151
    %v2530 = vpack.c.b16 %v2159, %v2152
    %v2531 = vpack.c.b16 %v2160, %v2153
    %v2532 = vpack.c.b16 %v2161, %v2154
    %v2533 = vpack.c.b16 %v2162, %v2155
    %v2534 = vpack.c.b16 %v2163, %v2156
    %v2535 = vpack.c.b16 %v2171, %v2164
    %v2536 = vpack.c.b16 %v2172, %v2165
    %v2537 = vpack.c.b16 %v2173, %v2166
    %v2538 = vpack.c.b16 %v2174, %v2167
    %v2539 = vpack.c.b16 %v2175, %v2168
    %v2540 = vpack.c.b16 %v2176, %v2169
    %v2541 = vpack.c.b16 %v2177, %v2170
    %v2542 = vpack.c.b16 %v2185, %v2178
    %v2543 = vpack.c.b16 %v2186, %v2179
    %v2544 = vpack.c.b16 %v2187, %v2180
    %v2545 = vpack.c.b16 %v2188, %v2181
    %v2546 = vpack.c.b16 %v2189, %v2182
    %v2547 = vpack.c.b16 %v2190, %v2183
    %v2548 = vpack.c.b16 %v2191, %v2184
    %v2549 = vpack.c.b16 %v2199, %v2192
    %v2550 = vpack.c.b16 %v2200, %v2193
    %v2551 = vpack.c.b16 %v2201, %v2194
    %v2552 = vpack.c.b16 %v2202, %v2195
    %v2553 = vpack.c.b16 %v2203, %v2196
    %v2554 = vpack.c.b16 %v2204, %v2197
    %v2555 = vpack.c.b16 %v2205, %v2198
    %v2556 = vpack.c.b16 %v2213, %v2206
    %v2557 = vpack.c.b16 %v2214, %v2207
    %v2558 = vpack.c.b16 %v2215, %v2208
    %v2559 = vpack.c.b16 %v2216, %v2209
    %v2560 = vpack.c.b16 %v2217, %v2210
    %v2561 = vpack.c.b16 %v2218, %v2211
    %v2562 = vpack.c.b16 %v2219, %v2212
    %v2563 = vpack.c.b16 %v2227, %v2220
    %v2564 = vpack.c.b16 %v2228, %v2221
    %v2565 = vpack.c.b16 %v2229, %v2222
    %v2566 = vpack.c.b16 %v2230, %v2223
    %v2567 = vpack.c.b16 %v2231, %v2224
    %v2568 = vpack.c.b16 %v2232, %v2225
    %v2569 = vpack.c.b16 %v2233, %v2226
    %v2570 = vpack.c.b16 %v2241, %v2234
    %v2571 = vpack.c.b16 %v2242, %v2235
    %v2572 = vpack.c.b16 %v2243, %v2236
    %v2573 = vpack.c.b16 %v2244, %v2237
    %v2574 = vpack.c.b16 %v2245, %v2238
    %v2575 = vpack.c.b16 %v2246, %v2239
    %v2576 = vpack.c.b16 %v2247, %v2240
    %v2577 = vpack.c.b16 %v2255, %v2248
    %v2578 = vpack.c.b16 %v2256, %v2249
    %v2579 = vpack.c.b16 %v2257, %v2250
    %v2580 = vpack.c.b16 %v2258, %v2251
    %v2581 = vpack.c.b16 %v2259, %v2252
    %v2582 = vpack.c.b16 %v2260, %v2253
    %v2583 = vpack.c.b16 %v2261, %v2254
    %v2584 = vpack.c.b16 %v2269, %v2262
    %v2585 = vpack.c.b16 %v2270, %v2263
    %v2586 = vpack.c.b16 %v2271, %v2264
    %v2587 = vpack.c.b16 %v2272, %v2265
    %v2588 = vpack.c.b16 %v2273, %v2266
    %v2589 = vpack.c.b16 %v2274, %v2267
    %v2590 = vpack.c.b16 %v2275, %v2268
    %v2591 = vpack.c.b16 %v2283, %v2276
    %v2592 = vpack.c.b16 %v2284, %v2277
    %v2593 = vpack.c.b16 %v2285, %v2278
    %v2594 = vpack.c.b16 %v2286, %v2279
    %v2595 = vpack.c.b16 %v2287, %v2280
    %v2596 = vpack.c.b16 %v2288, %v2281
    %v2597 = vpack.c.b16 %v2289, %v2282
    %v2598 = vpack.c.b16 %v2297, %v2290
    %v2599 = vpack.c.b16 %v2298, %v2291
    %v2600 = vpack.c.b16 %v2299, %v2292
    %v2601 = vpack.c.b16 %v2300, %v2293
    %v2602 = vpack.c.b16 %v2301, %v2294
    %v2603 = vpack.c.b16 %v2302, %v2295
    %v2604 = vpack.c.b16 %v2303, %v2296
    %v2605 = vpack.c.b16 %v2311, %v2304
    %v2606 = vpack.c.b16 %v2312, %v2305
    %v2607 = vpack.c.b16 %v2313, %v2306
    %v2608 = vpack.c.b16 %v2314, %v2307
    %v2609 = vpack.c.b16 %v2315, %v2308
    %v2610 = vpack.c.b16 %v2316, %v2309
    %v2611 = vpack.c.b16 %v2317, %v2310
    %v2612 = vpack.c.b16 %v2325, %v2318
    %v2613 = vpack.c.b16 %v2326, %v2319
    %v2614 = vpack.c.b16 %v2327, %v2320
    %v2615 = vpack.c.b16 %v2328, %v2321
    %v2616 = vpack.c.b16 %v2329, %v2322
    %v2617 = vpack.c.b16 %v2330, %v2323
    %v2618 = vpack.c.b16 %v2331, %v2324
    %v2619 = vpack.c.b16 %v2339, %v2332
    %v2620 = vpack.c.b16 %v2340, %v2333
    %v2621 = vpack.c.b16 %v2341, %v2334
    %v2622 = vpack.c.b16 %v2342, %v2335
    %v2623 = vpack.c.b16 %v2343, %v2336
    %v2624 = vpack.c.b16 %v2344, %v2337
    %v2625 = vpack.c.b16 %v2345, %v2338
    %v2626 = vpack.c.b16 %v2353, %v2346
    %v2627 = vpack.c.b16 %v2354, %v2347
    %v2628 = vpack.c.b16 %v2355, %v2348
    %v2629 = vpack.c.b16 %v2356, %v2349
    %v2630 = vpack.c.b16 %v2357, %v2350
    %v2631 = vpack.c.b16 %v2358, %v2351
    %v2632 = vpack.c.b16 %v2359, %v2352
    %v2633 = vpack.c.b16 %v2367, %v2360
    %v2634 = vpack.c.b16 %v2368, %v2361
    %v2635 = vpack.c.b16 %v2369, %v2362
    %v2636 = vpack.c.b16 %v2370, %v2363
    %v2637 = vpack.c.b16 %v2371, %v2364
    %v2638 = vpack.c.b16 %v2372, %v2365
    %v2639 = vpack.c.b16 %v2373, %v2366
    %v2640 = vpack.c.b16 %v2381, %v2374
    %v2641 = vpack.c.b16 %v2382, %v2375
    %v2642 = vpack.c.b16 %v2383, %v2376
    %v2643 = vpack.c.b16 %v2384, %v2377
    %v2644 = vpack.c.b16 %v2385, %v2378
    %v2645 = vpack.c.b16 %v2386, %v2379
    %v2646 = vpack.c.b16 %v2387, %v2380
    %v2647 = vpack.c.b16 %v2395, %v2388
    %v2648 = vpack.c.b16 %v2396, %v2389
    %v2649 = vpack.c.b16 %v2397, %v2390
    %v2650 = vpack.c.b16 %v2398, %v2391
    %v2651 = vpack.c.b16 %v2399, %v2392
    %v2652 = vpack.c.b16 %v2400, %v2393
    %v2653 = vpack.c.b16 %v2401, %v2394
    %v2654 = vpack.c.b16 %v2409, %v2402
    %v2655 = vpack.c.b16 %v2410, %v2403
    %v2656 = vpack.c.b16 %v2411, %v2404
    %v2657 = vpack.c.b16 %v2412, %v2405
    %v2658 = vpack.c.b16 %v2413, %v2406
    %v2659 = vpack.c.b16 %v2414, %v2407
    %v2660 = vpack.c.b16 %v2415, %v2408
    %v2661 = vpack.c.b16 %v2423, %v2416
    %v2662 = vpack.c.b16 %v2424, %v2417
    %v2663 = vpack.c.b16 %v2425, %v2418
    %v2664 = vpack.c.b16 %v2426, %v2419
    %v2665 = vpack.c.b16 %v2427, %v2420
    %v2666 = vpack.c.b16 %v2428, %v2421
    %v2667 = vpack.c.b16 %v2429, %v2422
    %v2668 = vpack.c.b16 %v2437, %v2430
    %v2669 = vpack.c.b16 %v2438, %v2431
    %v2670 = vpack.c.b16 %v2439, %v2432
    %v2671 = vpack.c.b16 %v2440, %v2433
    %v2672 = vpack.c.b16 %v2441, %v2434
    %v2673 = vpack.c.b16 %v2442, %v2435
    %v2674 = vpack.c.b16 %v2443, %v2436
    %v2675 = vpack.c.b16 %v2451, %v2444
    %v2676 = vpack.c.b16 %v2452, %v2445
    %v2677 = vpack.c.b16 %v2453, %v2446
    %v2678 = vpack.c.b16 %v2454, %v2447
    %v2679 = vpack.c.b16 %v2455, %v2448
    %v2680 = vpack.c.b16 %v2456, %v2449
    %v2681 = vpack.c.b16 %v2457, %v2450
    %2906 = vmatprep.subr.bf16.mxu0 %v2508
    %2907 = vmatpush1.bf16.msra.mxu0 %v2507
    %2908 = vmatprep.subr.bf16.mxu0 %v2501
    %2909 = vmatpush1.bf16.msra.mxu0 %v2500
    %2910 = vmatprep.subr.bf16.mxu0 %v2494
    %2911 = vmatpush1.bf16.msra.mxu0 %v2493
    %2912 = vmatprep.subr.bf16.mxu0 %v2487
    %2913 = vmatpush1.bf16.msra.mxu0 %v2486
    %2914 = vmatprep.subr.bf16.mxu0 %v2480
    %2915 = vmatpush1.bf16.msra.mxu0 %v2479
    %2916 = vmatprep.subr.bf16.mxu0 %v2473
    %2917 = vmatpush1.bf16.msra.mxu0 %v2472
    %2918 = vmatprep.subr.bf16.mxu0 %v2466
    %2919 = vmatpush1.bf16.msra.mxu0 %v2465
    %2920 = vmatprep.subr.bf16.mxu0 %v2459
    %2921 = vmatpush1.bf16.msra.mxu0 %v2458
    %2922 = vmatprep.subr.bf16.mxu0 %v2564
    %2923 = vmatpush2.bf16.msra.mxu0 %v2563
    %2924 = vmatprep.subr.bf16.mxu0 %v2557
    %2925 = vmatpush2.bf16.msra.mxu0 %v2556
    %2926 = vmatprep.subr.bf16.mxu0 %v2550
    %2927 = vmatpush2.bf16.msra.mxu0 %v2549
    %2928 = vmatprep.subr.bf16.mxu0 %v2543
    %2929 = vmatpush2.bf16.msra.mxu0 %v2542
    %2930 = vmatprep.subr.bf16.mxu0 %v2536
    %2931 = vmatpush2.bf16.msra.mxu0 %v2535
    %2932 = vmatprep.subr.bf16.mxu0 %v2529
    %2933 = vmatpush2.bf16.msra.mxu0 %v2528
    %2934 = vmatprep.subr.bf16.mxu0 %v2522
    %2935 = vmatpush2.bf16.msra.mxu0 %v2521
    %2936 = vmatprep.subr.bf16.mxu0 %v2515
    %2937 = vmatpush2.bf16.msra.mxu0 %v2514
    %2938 = vmatprep.mubr.bf16.mxu0 %v1458
    %2939 = vmatmul.mubr.bf16.gmra.mxu0 %v1457
    %v2940 = vpop.f32.mrf.mxu0
    %v2941 = vadd.f32 %v1722, %v2940
    %v2942 = vpop.f32.mrf.mxu0
    %v2943 = vadd.f32 %v1726, %v2942
    %v2944 = vpop.f32.mrf.mxu0
    %v2945 = vadd.f32 %v1722, %v2944
    %v2946 = vpop.f32.mrf.mxu0
    %v2947 = vadd.f32 %v1726, %v2946
    %2948 = vdwg.mxu0
    %2949 = vmatprep.subr.bf16.mxu0 %v2620
    %2950 = vmatpush1.bf16.msra.mxu0 %v2619
    %2951 = vmatprep.subr.bf16.mxu0 %v2613
    %2952 = vmatpush1.bf16.msra.mxu0 %v2612
    %2953 = vmatprep.subr.bf16.mxu0 %v2606
    %2954 = vmatpush1.bf16.msra.mxu0 %v2605
    %2955 = vmatprep.subr.bf16.mxu0 %v2599
    %2956 = vmatpush1.bf16.msra.mxu0 %v2598
    %2957 = vmatprep.subr.bf16.mxu0 %v2592
    %2958 = vmatpush1.bf16.msra.mxu0 %v2591
    %2959 = vmatprep.subr.bf16.mxu0 %v2585
    %2960 = vmatpush1.bf16.msra.mxu0 %v2584
    %2961 = vmatprep.subr.bf16.mxu0 %v2578
    %2962 = vmatpush1.bf16.msra.mxu0 %v2577
    %2963 = vmatprep.subr.bf16.mxu0 %v2571
    %2964 = vmatpush1.bf16.msra.mxu0 %v2570
    %2965 = vmatprep.subr.bf16.mxu0 %v2676
    %2966 = vmatpush2.bf16.msra.mxu0 %v2675
    %2967 = vmatprep.subr.bf16.mxu0 %v2669
    %2968 = vmatpush2.bf16.msra.mxu0 %v2668
    %2969 = vmatprep.subr.bf16.mxu0 %v2662
    %2970 = vmatpush2.bf16.msra.mxu0 %v2661
    %2971 = vmatprep.subr.bf16.mxu0 %v2655
    %2972 = vmatpush2.bf16.msra.mxu0 %v2654
    %2973 = vmatprep.subr.bf16.mxu0 %v2648
    %2974 = vmatpush2.bf16.msra.mxu0 %v2647
    %2975 = vmatprep.subr.bf16.mxu0 %v2641
    %2976 = vmatpush2.bf16.msra.mxu0 %v2640
    %2977 = vmatprep.subr.bf16.mxu0 %v2634
    %2978 = vmatpush2.bf16.msra.mxu0 %v2633
    %2979 = vmatprep.subr.bf16.mxu0 %v2627
    %2980 = vmatpush2.bf16.msra.mxu0 %v2626
    %2981 = vmatprep.mubr.bf16.mxu0 %v1460
    %2982 = vmatmul.mubr.bf16.gmra.mxu0 %v1459
    %v2983 = vpop.f32.mrf.mxu0
    %v2984 = vadd.f32 %v2941, %v2983
    %v2985 = vpop.f32.mrf.mxu0
    %v2986 = vadd.f32 %v2943, %v2985
    %v2987 = vpop.f32.mrf.mxu0
    %v2988 = vadd.f32 %v2945, %v2987
    %v2989 = vpop.f32.mrf.mxu0
    %v2990 = vadd.f32 %v2947, %v2989
    %2991 = vdwg.mxu0
    %2992 = vmatprep.subr.bf16.mxu0 %v2510
    %2993 = vmatpush1.bf16.msra.mxu0 %v2509
    %2994 = vmatprep.subr.bf16.mxu0 %v2503
    %2995 = vmatpush1.bf16.msra.mxu0 %v2502
    %2996 = vmatprep.subr.bf16.mxu0 %v2496
    %2997 = vmatpush1.bf16.msra.mxu0 %v2495
    %2998 = vmatprep.subr.bf16.mxu0 %v2489
    %2999 = vmatpush1.bf16.msra.mxu0 %v2488
    %3000 = vmatprep.subr.bf16.mxu0 %v2482
    %3001 = vmatpush1.bf16.msra.mxu0 %v2481
    %3002 = vmatprep.subr.bf16.mxu0 %v2475
    %3003 = vmatpush1.bf16.msra.mxu0 %v2474
    %3004 = vmatprep.subr.bf16.mxu0 %v2468
    %3005 = vmatpush1.bf16.msra.mxu0 %v2467
    %3006 = vmatprep.subr.bf16.mxu0 %v2461
    %3007 = vmatpush1.bf16.msra.mxu0 %v2460
    %3008 = vmatprep.subr.bf16.mxu0 %v2566
    %3009 = vmatpush2.bf16.msra.mxu0 %v2565
    %3010 = vmatprep.subr.bf16.mxu0 %v2559
    %3011 = vmatpush2.bf16.msra.mxu0 %v2558
    %3012 = vmatprep.subr.bf16.mxu0 %v2552
    %3013 = vmatpush2.bf16.msra.mxu0 %v2551
    %3014 = vmatprep.subr.bf16.mxu0 %v2545
    %3015 = vmatpush2.bf16.msra.mxu0 %v2544
    %3016 = vmatprep.subr.bf16.mxu0 %v2538
    %3017 = vmatpush2.bf16.msra.mxu0 %v2537
    %3018 = vmatprep.subr.bf16.mxu0 %v2531
    %3019 = vmatpush2.bf16.msra.mxu0 %v2530
    %3020 = vmatprep.subr.bf16.mxu0 %v2524
    %3021 = vmatpush2.bf16.msra.mxu0 %v2523
    %3022 = vmatprep.subr.bf16.mxu0 %v2517
    %3023 = vmatpush2.bf16.msra.mxu0 %v2516
    %3024 = vmatprep.mubr.bf16.mxu0 %v1458
    %3025 = vmatmul.mubr.bf16.gmra.mxu0 %v1457
    %v3026 = vpop.f32.mrf.mxu0
    %v3027 = vadd.f32 %v1730, %v3026
    %v3028 = vpop.f32.mrf.mxu0
    %v3029 = vadd.f32 %v1734, %v3028
    %v3030 = vpop.f32.mrf.mxu0
    %v3031 = vadd.f32 %v1730, %v3030
    %v3032 = vpop.f32.mrf.mxu0
    %v3033 = vadd.f32 %v1734, %v3032
    %3034 = vdwg.mxu0
    %3035 = vmatprep.subr.bf16.mxu0 %v2622
    %3036 = vmatpush1.bf16.msra.mxu0 %v2621
    %3037 = vmatprep.subr.bf16.mxu0 %v2615
    %3038 = vmatpush1.bf16.msra.mxu0 %v2614
    %3039 = vmatprep.subr.bf16.mxu0 %v2608
    %3040 = vmatpush1.bf16.msra.mxu0 %v2607
    %3041 = vmatprep.subr.bf16.mxu0 %v2601
    %3042 = vmatpush1.bf16.msra.mxu0 %v2600
    %3043 = vmatprep.subr.bf16.mxu0 %v2594
    %3044 = vmatpush1.bf16.msra.mxu0 %v2593
    %3045 = vmatprep.subr.bf16.mxu0 %v2587
    %3046 = vmatpush1.bf16.msra.mxu0 %v2586
    %3047 = vmatprep.subr.bf16.mxu0 %v2580
    %3048 = vmatpush1.bf16.msra.mxu0 %v2579
    %3049 = vmatprep.subr.bf16.mxu0 %v2573
    %3050 = vmatpush1.bf16.msra.mxu0 %v2572
    %3051 = vmatprep.subr.bf16.mxu0 %v2678
    %3052 = vmatpush2.bf16.msra.mxu0 %v2677
    %3053 = vmatprep.subr.bf16.mxu0 %v2671
    %3054 = vmatpush2.bf16.msra.mxu0 %v2670
    %3055 = vmatprep.subr.bf16.mxu0 %v2664
    %3056 = vmatpush2.bf16.msra.mxu0 %v2663
    %3057 = vmatprep.subr.bf16.mxu0 %v2657
    %3058 = vmatpush2.bf16.msra.mxu0 %v2656
    %3059 = vmatprep.subr.bf16.mxu0 %v2650
    %3060 = vmatpush2.bf16.msra.mxu0 %v2649
    %3061 = vmatprep.subr.bf16.mxu0 %v2643
    %3062 = vmatpush2.bf16.msra.mxu0 %v2642
    %3063 = vmatprep.subr.bf16.mxu0 %v2636
    %3064 = vmatpush2.bf16.msra.mxu0 %v2635
    %3065 = vmatprep.subr.bf16.mxu0 %v2629
    %3066 = vmatpush2.bf16.msra.mxu0 %v2628
    %3067 = vmatprep.mubr.bf16.mxu0 %v1460
    %3068 = vmatmul.mubr.bf16.gmra.mxu0 %v1459
    %v3069 = vpop.f32.mrf.mxu0
    %v3070 = vadd.f32 %v3027, %v3069
    %v3071 = vpop.f32.mrf.mxu0
    %v3072 = vadd.f32 %v3029, %v3071
    %v3073 = vpop.f32.mrf.mxu0
    %v3074 = vadd.f32 %v3031, %v3073
    %v3075 = vpop.f32.mrf.mxu0
    %v3076 = vadd.f32 %v3033, %v3075
    %3077 = vdwg.mxu0
    %3078 = vmatprep.subr.bf16.mxu0 %v2512
    %3079 = vmatpush1.bf16.msra.mxu0 %v2511
    %3080 = vmatprep.subr.bf16.mxu0 %v2505
    %3081 = vmatpush1.bf16.msra.mxu0 %v2504
    %3082 = vmatprep.subr.bf16.mxu0 %v2498
    %3083 = vmatpush1.bf16.msra.mxu0 %v2497
    %3084 = vmatprep.subr.bf16.mxu0 %v2491
    %3085 = vmatpush1.bf16.msra.mxu0 %v2490
    %3086 = vmatprep.subr.bf16.mxu0 %v2484
    %3087 = vmatpush1.bf16.msra.mxu0 %v2483
    %3088 = vmatprep.subr.bf16.mxu0 %v2477
    %3089 = vmatpush1.bf16.msra.mxu0 %v2476
    %3090 = vmatprep.subr.bf16.mxu0 %v2470
    %3091 = vmatpush1.bf16.msra.mxu0 %v2469
    %3092 = vmatprep.subr.bf16.mxu0 %v2463
    %3093 = vmatpush1.bf16.msra.mxu0 %v2462
    %3094 = vmatprep.subr.bf16.mxu0 %v2568
    %3095 = vmatpush2.bf16.msra.mxu0 %v2567
    %3096 = vmatprep.subr.bf16.mxu0 %v2561
    %3097 = vmatpush2.bf16.msra.mxu0 %v2560
    %3098 = vmatprep.subr.bf16.mxu0 %v2554
    %3099 = vmatpush2.bf16.msra.mxu0 %v2553
    %3100 = vmatprep.subr.bf16.mxu0 %v2547
    %3101 = vmatpush2.bf16.msra.mxu0 %v2546
    %3102 = vmatprep.subr.bf16.mxu0 %v2540
    %3103 = vmatpush2.bf16.msra.mxu0 %v2539
    %3104 = vmatprep.subr.bf16.mxu0 %v2533
    %3105 = vmatpush2.bf16.msra.mxu0 %v2532
    %3106 = vmatprep.subr.bf16.mxu0 %v2526
    %3107 = vmatpush2.bf16.msra.mxu0 %v2525
    %3108 = vmatprep.subr.bf16.mxu0 %v2519
    %3109 = vmatpush2.bf16.msra.mxu0 %v2518
    %3110 = vmatprep.mubr.bf16.mxu0 %v1458
    %3111 = vmatmul.mubr.bf16.gmra.mxu0 %v1457
    %v3112 = vpop.f32.mrf.mxu0
    %v3113 = vadd.f32 %v1738, %v3112
    %v3114 = vpop.f32.mrf.mxu0
    %v3115 = vadd.f32 %v1742, %v3114
    %v3116 = vpop.f32.mrf.mxu0
    %v3117 = vadd.f32 %v1738, %v3116
    %v3118 = vpop.f32.mrf.mxu0
    %v3119 = vadd.f32 %v1742, %v3118
    %3120 = vdwg.mxu0
    %3121 = vmatprep.subr.bf16.mxu0 %v2624
    %3122 = vmatpush1.bf16.msra.mxu0 %v2623
    %3123 = vmatprep.subr.bf16.mxu0 %v2617
    %3124 = vmatpush1.bf16.msra.mxu0 %v2616
    %3125 = vmatprep.subr.bf16.mxu0 %v2610
    %3126 = vmatpush1.bf16.msra.mxu0 %v2609
    %3127 = vmatprep.subr.bf16.mxu0 %v2603
    %3128 = vmatpush1.bf16.msra.mxu0 %v2602
    %3129 = vmatprep.subr.bf16.mxu0 %v2596
    %3130 = vmatpush1.bf16.msra.mxu0 %v2595
    %3131 = vmatprep.subr.bf16.mxu0 %v2589
    %3132 = vmatpush1.bf16.msra.mxu0 %v2588
    %3133 = vmatprep.subr.bf16.mxu0 %v2582
    %3134 = vmatpush1.bf16.msra.mxu0 %v2581
    %3135 = vmatprep.subr.bf16.mxu0 %v2575
    %3136 = vmatpush1.bf16.msra.mxu0 %v2574
    %3137 = vmatprep.subr.bf16.mxu0 %v2680
    %3138 = vmatpush2.bf16.msra.mxu0 %v2679
    %3139 = vmatprep.subr.bf16.mxu0 %v2673
    %3140 = vmatpush2.bf16.msra.mxu0 %v2672
    %3141 = vmatprep.subr.bf16.mxu0 %v2666
    %3142 = vmatpush2.bf16.msra.mxu0 %v2665
    %3143 = vmatprep.subr.bf16.mxu0 %v2659
    %3144 = vmatpush2.bf16.msra.mxu0 %v2658
    %3145 = vmatprep.subr.bf16.mxu0 %v2652
    %3146 = vmatpush2.bf16.msra.mxu0 %v2651
    %3147 = vmatprep.subr.bf16.mxu0 %v2645
    %3148 = vmatpush2.bf16.msra.mxu0 %v2644
    %3149 = vmatprep.subr.bf16.mxu0 %v2638
    %3150 = vmatpush2.bf16.msra.mxu0 %v2637
    %3151 = vmatprep.subr.bf16.mxu0 %v2631
    %3152 = vmatpush2.bf16.msra.mxu0 %v2630
    %3153 = vmatprep.mubr.bf16.mxu0 %v1460
    %3154 = vmatmul.mubr.bf16.gmra.mxu0 %v1459
    %v3155 = vpop.f32.mrf.mxu0
    %v3156 = vadd.f32 %v3113, %v3155
    %v3157 = vpop.f32.mrf.mxu0
    %v3158 = vadd.f32 %v3115, %v3157
    %v3159 = vpop.f32.mrf.mxu0
    %v3160 = vadd.f32 %v3117, %v3159
    %v3161 = vpop.f32.mrf.mxu0
    %v3162 = vadd.f32 %v3119, %v3161
    %3163 = vdwg.mxu0
    %3164 = vmatprep.subr.bf16.mxu0 0
    %3165 = vmatpush1.bf16.msra.mxu0 %v2513
    %3166 = vmatprep.subr.bf16.mxu0 0
    %3167 = vmatpush1.bf16.msra.mxu0 %v2506
    %3168 = vmatprep.subr.bf16.mxu0 0
    %3169 = vmatpush1.bf16.msra.mxu0 %v2499
    %3170 = vmatprep.subr.bf16.mxu0 0
    %3171 = vmatpush1.bf16.msra.mxu0 %v2492
    %3172 = vmatprep.subr.bf16.mxu0 0
    %3173 = vmatpush1.bf16.msra.mxu0 %v2485
    %3174 = vmatprep.subr.bf16.mxu0 0
    %3175 = vmatpush1.bf16.msra.mxu0 %v2478
    %3176 = vmatprep.subr.bf16.mxu0 0
    %3177 = vmatpush1.bf16.msra.mxu0 %v2471
    %3178 = vmatprep.subr.bf16.mxu0 0
    %3179 = vmatpush1.bf16.msra.mxu0 %v2464
    %3180 = vmatprep.subr.bf16.mxu0 0
    %3181 = vmatpush2.bf16.msra.mxu0 %v2569
    %3182 = vmatprep.subr.bf16.mxu0 0
    %3183 = vmatpush2.bf16.msra.mxu0 %v2562
    %3184 = vmatprep.subr.bf16.mxu0 0
    %3185 = vmatpush2.bf16.msra.mxu0 %v2555
    %3186 = vmatprep.subr.bf16.mxu0 0
    %3187 = vmatpush2.bf16.msra.mxu0 %v2548
    %3188 = vmatprep.subr.bf16.mxu0 0
    %3189 = vmatpush2.bf16.msra.mxu0 %v2541
    %3190 = vmatprep.subr.bf16.mxu0 0
    %3191 = vmatpush2.bf16.msra.mxu0 %v2534
    %3192 = vmatprep.subr.bf16.mxu0 0
    %3193 = vmatpush2.bf16.msra.mxu0 %v2527
    %3194 = vmatprep.subr.bf16.mxu0 0
    %3195 = vmatpush2.bf16.msra.mxu0 %v2520
    %3196 = vmatprep.mubr.bf16.mxu0 %v1458
    %3197 = vmatmul.mubr.bf16.gmra.mxu0 %v1457
    %v3198 = vpop.f32.mrf.mxu0
    %v3199 = vadd.f32 %v1746, %v3198
    %v3200 = vpop.f32.mrf.mxu0
    %v3201 = vpop.f32.mrf.mxu0
    %v3202 = vadd.f32 %v1746, %v3201
    %v3203 = vpop.f32.mrf.mxu0
    %3204 = vdwg.mxu0
    %3205 = vmatprep.subr.bf16.mxu0 0
    %3206 = vmatpush1.bf16.msra.mxu0 %v2625
    %3207 = vmatprep.subr.bf16.mxu0 0
    %3208 = vmatpush1.bf16.msra.mxu0 %v2618
    %3209 = vmatprep.subr.bf16.mxu0 0
    %3210 = vmatpush1.bf16.msra.mxu0 %v2611
    %3211 = vmatprep.subr.bf16.mxu0 0
    %3212 = vmatpush1.bf16.msra.mxu0 %v2604
    %3213 = vmatprep.subr.bf16.mxu0 0
    %3214 = vmatpush1.bf16.msra.mxu0 %v2597
    %3215 = vmatprep.subr.bf16.mxu0 0
    %3216 = vmatpush1.bf16.msra.mxu0 %v2590
    %3217 = vmatprep.subr.bf16.mxu0 0
    %3218 = vmatpush1.bf16.msra.mxu0 %v2583
    %3219 = vmatprep.subr.bf16.mxu0 0
    %3220 = vmatpush1.bf16.msra.mxu0 %v2576
    %3221 = vmatprep.subr.bf16.mxu0 0
    %3222 = vmatpush2.bf16.msra.mxu0 %v2681
    %3223 = vmatprep.subr.bf16.mxu0 0
    %3224 = vmatpush2.bf16.msra.mxu0 %v2674
    %3225 = vmatprep.subr.bf16.mxu0 0
    %3226 = vmatpush2.bf16.msra.mxu0 %v2667
    %3227 = vmatprep.subr.bf16.mxu0 0
    %3228 = vmatpush2.bf16.msra.mxu0 %v2660
    %3229 = vmatprep.subr.bf16.mxu0 0
    %3230 = vmatpush2.bf16.msra.mxu0 %v2653
    %3231 = vmatprep.subr.bf16.mxu0 0
    %3232 = vmatpush2.bf16.msra.mxu0 %v2646
    %3233 = vmatprep.subr.bf16.mxu0 0
    %3234 = vmatpush2.bf16.msra.mxu0 %v2639
    %3235 = vmatprep.subr.bf16.mxu0 0
    %3236 = vmatpush2.bf16.msra.mxu0 %v2632
    %3237 = vmatprep.mubr.bf16.mxu0 %v1460
    %3238 = vmatmul.mubr.bf16.gmra.mxu0 %v1459
    %v3239 = vpop.f32.mrf.mxu0
    %v3240 = vadd.f32 %v3199, %v3239
    %v3241 = vpop.f32.mrf.mxu0
    %v3242 = vpop.f32.mrf.mxu0
    %v3243 = vadd.f32 %v3202, %v3242
    %v3244 = vpop.f32.mrf.mxu0
    %3245 = vdwg.mxu0
    %v3246 = vsub.f32 0.0, %v2984
    %v3247 = vsub.f32 0.0, %v2986
    %v3248 = vsub.f32 0.0, %v3070
    %v3249 = vsub.f32 0.0, %v3072
    %v3250 = vsub.f32 0.0, %v3156
    %v3251 = vsub.f32 0.0, %v3158
    %v3252 = vsub.f32 0.0, %v3240
    %v3253 = vsub.f32 0.0, %v2988
    %v3254 = vsub.f32 0.0, %v2990
    %v3255 = vsub.f32 0.0, %v3074
    %v3256 = vsub.f32 0.0, %v3076
    %v3257 = vsub.f32 0.0, %v3160
    %v3258 = vsub.f32 0.0, %v3162
    %v3259 = vsub.f32 0.0, %v3243
    %v3260 = vmul.f32 %v3246, 1.442695
    %v3261 = vpow.pop %v3260
    %v3262 = vmul.f32 %v3247, 1.442695
    %v3263 = vpow.pop %v3262
    %v3264 = vmul.f32 %v3248, 1.442695
    %v3265 = vpow.pop %v3264
    %v3266 = vmul.f32 %v3249, 1.442695
    %v3267 = vpow.pop %v3266
    %v3268 = vmul.f32 %v3250, 1.442695
    %v3269 = vpow.pop %v3268
    %v3270 = vmul.f32 %v3251, 1.442695
    %v3271 = vpow.pop %v3270
    %v3272 = vmul.f32 %v3252, 1.442695
    %v3273 = vpow.pop %v3272
    %v3274 = vmul.f32 %v3253, 1.442695
    %v3275 = vpow.pop %v3274
    %v3276 = vmul.f32 %v3254, 1.442695
    %v3277 = vpow.pop %v3276
    %v3278 = vmul.f32 %v3255, 1.442695
    %v3279 = vpow.pop %v3278
    %v3280 = vmul.f32 %v3256, 1.442695
    %v3281 = vpow.pop %v3280
    %v3282 = vmul.f32 %v3257, 1.442695
    %v3283 = vpow.pop %v3282
    %v3284 = vmul.f32 %v3258, 1.442695
    %v3285 = vpow.pop %v3284
    %v3286 = vmul.f32 %v3259, 1.442695
    %v3287 = vpow.pop %v3286
    %v3288 = vadd.f32 %v3261, 1.0
    %v3289 = vadd.f32 %v3263, 1.0
    %v3290 = vadd.f32 %v3265, 1.0
    %v3291 = vadd.f32 %v3267, 1.0
    %v3292 = vadd.f32 %v3269, 1.0
    %v3293 = vadd.f32 %v3271, 1.0
    %v3294 = vadd.f32 %v3273, 1.0
    %v3295 = vadd.f32 %v3275, 1.0
    %v3296 = vadd.f32 %v3277, 1.0
    %v3297 = vadd.f32 %v3279, 1.0
    %v3298 = vadd.f32 %v3281, 1.0
    %v3299 = vadd.f32 %v3283, 1.0
    %v3300 = vadd.f32 %v3285, 1.0
    %v3301 = vadd.f32 %v3287, 1.0
    %v3302 = vrcp.pop %v3288
    %v3303 = vrcp.pop %v3289
    %v3304 = vrcp.pop %v3290
    %v3305 = vrcp.pop %v3291
    %v3306 = vrcp.pop %v3292
    %v3307 = vrcp.pop %v3293
    %v3308 = vrcp.pop %v3294
    %v3309 = vrcp.pop %v3295
    %v3310 = vrcp.pop %v3296
    %v3311 = vrcp.pop %v3297
    %v3312 = vrcp.pop %v3298
    %v3313 = vrcp.pop %v3299
    %v3314 = vrcp.pop %v3300
    %v3315 = vrcp.pop %v3301
    %3316 = vst [vmem:[#allocation2] sm:$0xff] %v3302
    %3317 = vst [vmem:[#allocation2 + $0x8] sm:$0xff] %v3303
    %3318 = vst [vmem:[#allocation2 + $0x10] sm:$0xff] %v3304
    %3319 = vst [vmem:[#allocation2 + $0x18] sm:$0xff] %v3305
    %3320 = vst [vmem:[#allocation2 + $0x20] sm:$0xff] %v3306
    %3321 = vst [vmem:[#allocation2 + $0x28] sm:$0xff] %v3307
    %vm3322 = vcmask 130048
    %3323 = vst.msk [vmem:[#allocation2 + $0x30] sm:$0xff] %vm3322, %v3308
    %3324 = vst [vmem:[#allocation2 + $0x38] sm:$0xff] %v3309
    %3325 = vst [vmem:[#allocation2 + $0x40] sm:$0xff] %v3310
    %3326 = vst [vmem:[#allocation2 + $0x48] sm:$0xff] %v3311
    %3327 = vst [vmem:[#allocation2 + $0x50] sm:$0xff] %v3312
    %3328 = vst [vmem:[#allocation2 + $0x58] sm:$0xff] %v3313
    %3329 = vst [vmem:[#allocation2 + $0x60] sm:$0xff] %v3314
    %3330 = vst.msk [vmem:[#allocation2 + $0x68] sm:$0xff] %vm3322, %v3315
    // Predicated region
    $region30: #{decoder_forward.1} parent=1 // pred_check
      _
    $region31: #{decoder_forward.1} parent=1 // pred_check_branch
      %3332 = sbr.rel (0) target = $region33
    $region32: #{decoder_forward.1} parent=1 // pred_region
      %s3334 = ssub.s32 1792, 1792
      %3335 = vsyncadd [#allocation3], %s3334
      %s3336 = sshll.u32 [#allocation2], 4
      %s3337 = int_to_ptr.vmem [resolvable:$true] %s3336
      %3342 = dma.vmem_to_hbm [thread:$0]  %s3337, 1792, %s7, [#allocation3], 896, 896, 56
    $region33: #{decoder_forward.1} parent=1 // pred_fallthru
      _
    // Predicated region
    $region34: #{decoder_forward.1} parent=1 // pred_check
      _
    $region35: #{decoder_forward.1} parent=1 // pred_check_branch
      %3344 = sbr.rel (0) target = $region37
    $region36: #{decoder_forward.1} parent=1 // pred_region
      %3345 = dma.done [#allocation3], 1792
    $region37: #{decoder_forward.1} parent=1 // pred_fallthru
      _
    %3346 = vsyncpa [#allocation3], 1

</llo_original>
